<compile_context>
chip_gen: v6e
topology: v6e:2x2x1
jax: 0.10.0
libtpu: 0.0.40
codegen_flags: <defaults>
</compile_context>

<pallas_src>
import functools

import jax
import jax.numpy as jnp
from jax.experimental import pallas as pl
from jax.experimental.pallas import tpu as pltpu

_LANE = 128


def _round_up(x, m):
    return ((x + m - 1) // m) * m


def _rpn_head_kernel(x_ref, w9_ref, bconv_ref, whead_ref, bhead_ref,
                     out_ref, xpad_ref):
    # Shapes (per grid step = one batch element):
    #   x_ref     : (1, H, W, Cp)   bf16  -- unpadded NHWC input tile
    #   w9_ref    : (9*Cp, Cp)      bf16  -- im2col-packed 3x3 conv weight
    #   bconv_ref : (1, Cp)         f32
    #   whead_ref : (Cp, OUTP)      bf16  -- fused [cls | bbox] 1x1 weights, lane-padded
    #   bhead_ref : (1, OUTP)       f32
    #   out_ref   : (1, H*W, OUTP)  f32   -- lane-dense fused head output
    #   xpad_ref  : (H+2, W+2, Cp)  bf16  -- VMEM scratch holding the zero-halo'd tile
    H = x_ref.shape[1]
    W = x_ref.shape[2]
    Cp = x_ref.shape[3]

    # Build the zero-halo'd tile in VMEM (no spatially padded HBM copy in the wrapper).
    xpad_ref[...] = jnp.zeros_like(xpad_ref)
    xpad_ref[pl.ds(1, H), pl.ds(1, W), :] = x_ref[0]
    xpad = xpad_ref[...]  # (H+2, W+2, Cp)

    # im2col: (H*W, 9*Cp) patch matrix, taps ordered (dy, dx)-major / channel-minor
    # to match the packing of w9_ref.
    patches = jnp.concatenate(
        [xpad[dy:dy + H, dx:dx + W, :].reshape(H * W, Cp)
         for dy in range(3) for dx in range(3)],
        axis=1)

    # 3x3 conv as a single K=9*Cp MXU matmul, then bias + ReLU.
    acc = jnp.dot(patches, w9_ref[...], preferred_element_type=jnp.float32)
    t = jnp.maximum(acc + bconv_ref[0], 0.0).astype(whead_ref.dtype)

    # Fused cls + bbox 1x1 heads: one matmul, one lane-dense store.
    out = jnp.dot(t, whead_ref[...], preferred_element_type=jnp.float32) + bhead_ref[0]
    out_ref[...] = out.reshape(1, H * W, out_ref.shape[2]).astype(out_ref.dtype)


@functools.partial(jax.jit, static_argnames=("num_anchors", "box_dim"))
def rpn_head_level(x_nchw, params, num_anchors, box_dim):
    """Run the RPN head on one feature level. x_nchw: (N, C, H, W) f32 -> NCHW outputs."""
    w9, bconv, whead, bhead = params
    N, C, H, W = x_nchw.shape
    Cp = w9.shape[1]
    OUTP = whead.shape[1]
    A = num_anchors
    B4 = num_anchors * box_dim

    # NCHW -> NHWC, channel axis zero-padded to a lane-dense multiple of 128, bf16.
    x_nhwc = jnp.transpose(x_nchw, (0, 2, 3, 1))
    if Cp > C:
        x_nhwc = jnp.pad(x_nhwc, ((0, 0), (0, 0), (0, 0), (0, Cp - C)))
    x_nhwc = x_nhwc.astype(jnp.bfloat16)

    # TODO(synk): for production FPN resolutions (e.g. C=256, 200x336) tile H into
    # halo'd strips and set vmem_limit_bytes explicitly; the full-image block only
    # fits VMEM at small spatial sizes like the ones tested here.
    out = pl.pallas_call(
        _rpn_head_kernel,
        out_shape=jax.ShapeDtypeStruct((N, H * W, OUTP), jnp.float32),
        grid_spec=pltpu.PrefetchScalarGridSpec(
            num_scalar_prefetch=0,
            grid=(N,),
            in_specs=[
                pl.BlockSpec((1, H, W, Cp), lambda i: (i, 0, 0, 0)),
                pl.BlockSpec((9 * Cp, Cp), lambda i: (0, 0)),
                pl.BlockSpec((1, Cp), lambda i: (0, 0)),
                pl.BlockSpec((Cp, OUTP), lambda i: (0, 0)),
                pl.BlockSpec((1, OUTP), lambda i: (0, 0)),
            ],
            out_specs=pl.BlockSpec((1, H * W, OUTP), lambda i: (i, 0, 0)),
            scratch_shapes=[pltpu.VMEM((H + 2, W + 2, Cp), jnp.bfloat16)],
        ),
        compiler_params=pltpu.CompilerParams(dimension_semantics=("parallel",)),
    )(x_nhwc, w9, bconv, whead, bhead)

    # Slice the fused lane-dense output back into logits / bbox, NCHW like PyTorch.
    logits = out[:, :, :A].reshape(N, H, W, A).transpose(0, 3, 1, 2)
    bbox = out[:, :, A:A + B4].reshape(N, H, W, B4).transpose(0, 3, 1, 2)
    return logits, bbox


def rpn_head_forward(features, params, num_anchors, box_dim):
    """features: list of (N, C, H, W) arrays -> (list of logits, list of bbox_reg)."""
    logits, bbox_reg = [], []
    for x in features:
        l, b = rpn_head_level(x, params, num_anchors, box_dim)
        logits.append(l)
        bbox_reg.append(b)
    return logits, bbox_reg


def init_params(key, in_channels, num_anchors, box_dim):
    """Deterministic init mirroring the PyTorch module (normal std=0.01, zero bias)."""
    k1, k2, k3 = jax.random.split(key, 3)
    C, A, B4 = in_channels, num_anchors, num_anchors * box_dim
    Cp = max(_LANE, _round_up(C, _LANE))
    OUTP = max(_LANE, _round_up(A + B4, _LANE))

    # PyTorch layouts: conv (Cout, Cin, 3, 3); 1x1 convs (Cout, Cin, 1, 1)
    wconv = 0.01 * jax.random.normal(k1, (C, C, 3, 3), jnp.float32)
    wcls = 0.01 * jax.random.normal(k2, (A, C, 1, 1), jnp.float32)
    wbox = 0.01 * jax.random.normal(k3, (B4, C, 1, 1), jnp.float32)
    bconv = jnp.zeros((C,), jnp.float32)
    bcls = jnp.zeros((A,), jnp.float32)
    bbox_b = jnp.zeros((B4,), jnp.float32)

    # --- repack for the kernel ---
    # 3x3 conv: (Cout, Cin, 3, 3) -> (ky, kx, Cin, Cout) -> pad -> (9*Cp, Cp) bf16
    w33 = jnp.transpose(wconv, (2, 3, 1, 0))
    w33 = jnp.pad(w33, ((0, 0), (0, 0), (0, Cp - C), (0, Cp - C)))
    w9 = w33.reshape(9 * Cp, Cp).astype(jnp.bfloat16)
    bconv_k = jnp.pad(bconv, (0, Cp - C)).reshape(1, Cp)

    # Fused 1x1 heads: (Cin, A+B4) -> zero-padded (Cp, OUTP) bf16, biases f32 (1, OUTP)
    whead = jnp.concatenate([wcls[:, :, 0, 0], wbox[:, :, 0, 0]], axis=0).T  # (C, A+B4)
    whead = jnp.pad(whead, ((0, Cp - C), (0, OUTP - (A + B4)))).astype(jnp.bfloat16)
    bhead = jnp.pad(jnp.concatenate([bcls, bbox_b]), (0, OUTP - (A + B4))).reshape(1, OUTP)

    kernel_params = (w9, bconv_k, whead, bhead)
    torch_params = (wconv, bconv, wcls, bcls, wbox, bbox_b)
    return kernel_params, torch_params


def _ref_level(x_nchw, torch_params):
    """Plain-JAX reference matching the PyTorch forward, for correctness check."""
    wconv, bconv, wcls, bcls, wbox, bbox_b = torch_params
    dn = ("NCHW", "OIHW", "NCHW")
    t = jax.lax.conv_general_dilated(x_nchw, wconv, (1, 1), ((1, 1), (1, 1)),
                                     dimension_numbers=dn)
    t = jnp.maximum(t + bconv[None, :, None, None], 0.0)
    logits = jax.lax.conv_general_dilated(t, wcls, (1, 1), "VALID",
                                          dimension_numbers=dn) + bcls[None, :, None, None]
    bbox = jax.lax.conv_general_dilated(t, wbox, (1, 1), "VALID",
                                        dimension_numbers=dn) + bbox_b[None, :, None, None]
    return logits, bbox


if __name__ == "__main__":
    key = jax.random.PRNGKey(0)
    k_feat1, k_feat2, k_param = jax.random.split(key, 3)

    N, C = 2, 32          # batch, in_channels (same at every level)
    num_anchors, box_dim = 3, 4

    # Two feature levels (FPN-style), NCHW like PyTorch.
    features = [
        jax.random.normal(k_feat1, (N, C, 16, 16), jnp.float32),
        jax.random.normal(k_feat2, (N, C, 8, 8), jnp.float32),
    ]

    kernel_params, torch_params = init_params(k_param, C, num_anchors, box_dim)

    logits, bbox_reg = rpn_head_forward(features, kernel_params, num_anchors, box_dim)
    jax.block_until_ready(logits)
    jax.block_until_ready(bbox_reg)

    # Correctness check against a plain-JAX/XLA f32 reference of the same math.
    # Tolerances account for bf16 matmul operands (f32 accumulation).
    for x, l, b in zip(features, logits, bbox_reg):
        l_ref, b_ref = _ref_level(x, torch_params)
        assert l.shape == l_ref.shape and b.shape == b_ref.shape
        assert jnp.allclose(l, l_ref, atol=2e-3, rtol=2e-2)
        assert jnp.allclose(b, b_ref, atol=2e-3, rtol=2e-2)

    print("KERNEL_OK")
</pallas_src>

<mosaic_0001>
module attributes {stable_mosaic.version = 11 : i64} {
  func.func @_rpn_head_kernel(%arg0: i32, %arg1: memref<1x16x16x128xbf16, #tpu.memory_space<vmem>>, %arg2: memref<1152x128xbf16, #tpu.memory_space<vmem>>, %arg3: memref<1x128xf32, #tpu.memory_space<vmem>>, %arg4: memref<128x128xbf16, #tpu.memory_space<vmem>>, %arg5: memref<1x128xf32, #tpu.memory_space<vmem>>, %arg6: memref<1x256x128xf32, #tpu.memory_space<vmem>>, %arg7: memref<18x18x128xbf16, #tpu.memory_space<vmem>>) attributes {dimension_semantics = [#tpu.dimension_semantics<parallel>], iteration_bounds = array<i64: 2>, scalar_prefetch = 0 : i64, scratch_operands = 1 : i64, tpu.core_type = #tpu.core_type<tc>, window_params = [{transform_indices = @transform_0, window_bounds = array<i64: 1, 16, 16, 128>}, {pipeline_mode = #tpu.pipeline_mode<synchronous>, transform_indices = @transform_1, window_bounds = array<i64: 1152, 128>}, {pipeline_mode = #tpu.pipeline_mode<synchronous>, transform_indices = @transform_2, window_bounds = array<i64: 1, 128>}, {pipeline_mode = #tpu.pipeline_mode<synchronous>, transform_indices = @transform_3, window_bounds = array<i64: 128, 128>}, {pipeline_mode = #tpu.pipeline_mode<synchronous>, transform_indices = @transform_4, window_bounds = array<i64: 1, 128>}, {transform_indices = @transform_5, window_bounds = array<i64: 1, 256, 128>}]} {
    %cst = arith.constant 0.000000e+00 : bf16
    %0 = vector.broadcast %cst : bf16 to vector<18x18x128xbf16>
    %c0 = arith.constant 0 : index
    %c0_0 = arith.constant 0 : index
    %c0_1 = arith.constant 0 : index
    %1 = vector.load %arg7[%c0, %c0_0, %c0_1] : memref<18x18x128xbf16, #tpu.memory_space<vmem>>, vector<18x18x128xbf16>
    tpu.vector_store %arg7[%c0, %c0_0, %c0_1], %0 {strides = array<i32>} : memref<18x18x128xbf16, #tpu.memory_space<vmem>>, vector<18x18x128xbf16>,
    %c0_2 = arith.constant 0 : index
    %c0_3 = arith.constant 0 : index
    %c0_4 = arith.constant 0 : index
    %c0_5 = arith.constant 0 : index
    %2 = vector.load %arg1[%c0_2, %c0_3, %c0_4, %c0_5] : memref<1x16x16x128xbf16, #tpu.memory_space<vmem>>, vector<1x16x16x128xbf16>
    %3 = vector.shape_cast %2 : vector<1x16x16x128xbf16> to vector<16x16x128xbf16>
    %c1 = arith.constant 1 : index
    %c1_6 = arith.constant 1 : index
    %c0_7 = arith.constant 0 : index
    %4 = vector.load %arg7[%c1, %c1_6, %c0_7] : memref<18x18x128xbf16, #tpu.memory_space<vmem>>, vector<16x16x128xbf16>
    tpu.vector_store %arg7[%c1, %c1_6, %c0_7], %3 {strides = array<i32>} : memref<18x18x128xbf16, #tpu.memory_space<vmem>>, vector<16x16x128xbf16>,
    %c0_8 = arith.constant 0 : index
    %c0_9 = arith.constant 0 : index
    %c0_10 = arith.constant 0 : index
    %5 = vector.load %arg7[%c0_8, %c0_9, %c0_10] : memref<18x18x128xbf16, #tpu.memory_space<vmem>>, vector<18x18x128xbf16>
    %6 = vector.extract_strided_slice %5 {offsets = [0, 0, 0], sizes = [16, 16, 128], strides = [1, 1, 1]} : vector<18x18x128xbf16> to vector<16x16x128xbf16>
    %7 = vector.shape_cast %6 : vector<16x16x128xbf16> to vector<256x128xbf16>
    %8 = vector.extract_strided_slice %5 {offsets = [0, 1, 0], sizes = [16, 16, 128], strides = [1, 1, 1]} : vector<18x18x128xbf16> to vector<16x16x128xbf16>
    %9 = vector.shape_cast %8 : vector<16x16x128xbf16> to vector<256x128xbf16>
    %10 = vector.extract_strided_slice %5 {offsets = [0, 2, 0], sizes = [16, 16, 128], strides = [1, 1, 1]} : vector<18x18x128xbf16> to vector<16x16x128xbf16>
    %11 = vector.shape_cast %10 : vector<16x16x128xbf16> to vector<256x128xbf16>
    %12 = vector.extract_strided_slice %5 {offsets = [1, 0, 0], sizes = [16, 16, 128], strides = [1, 1, 1]} : vector<18x18x128xbf16> to vector<16x16x128xbf16>
    %13 = vector.shape_cast %12 : vector<16x16x128xbf16> to vector<256x128xbf16>
    %14 = vector.extract_strided_slice %5 {offsets = [1, 1, 0], sizes = [16, 16, 128], strides = [1, 1, 1]} : vector<18x18x128xbf16> to vector<16x16x128xbf16>
    %15 = vector.shape_cast %14 : vector<16x16x128xbf16> to vector<256x128xbf16>
    %16 = vector.extract_strided_slice %5 {offsets = [1, 2, 0], sizes = [16, 16, 128], strides = [1, 1, 1]} : vector<18x18x128xbf16> to vector<16x16x128xbf16>
    %17 = vector.shape_cast %16 : vector<16x16x128xbf16> to vector<256x128xbf16>
    %18 = vector.extract_strided_slice %5 {offsets = [2, 0, 0], sizes = [16, 16, 128], strides = [1, 1, 1]} : vector<18x18x128xbf16> to vector<16x16x128xbf16>
    %19 = vector.shape_cast %18 : vector<16x16x128xbf16> to vector<256x128xbf16>
    %20 = vector.extract_strided_slice %5 {offsets = [2, 1, 0], sizes = [16, 16, 128], strides = [1, 1, 1]} : vector<18x18x128xbf16> to vector<16x16x128xbf16>
    %21 = vector.shape_cast %20 : vector<16x16x128xbf16> to vector<256x128xbf16>
    %22 = vector.extract_strided_slice %5 {offsets = [2, 2, 0], sizes = [16, 16, 128], strides = [1, 1, 1]} : vector<18x18x128xbf16> to vector<16x16x128xbf16>
    %23 = vector.shape_cast %22 : vector<16x16x128xbf16> to vector<256x128xbf16>
    %24 = tpu.concatenate %7, %9, %11, %13, %15, %17, %19, %21, %23 in 1 : vector<256x128xbf16>, vector<256x128xbf16>, vector<256x128xbf16>, vector<256x128xbf16>, vector<256x128xbf16>, vector<256x128xbf16>, vector<256x128xbf16>, vector<256x128xbf16>, vector<256x128xbf16> -> vector<256x1152xbf16>
    %c0_11 = arith.constant 0 : index
    %c0_12 = arith.constant 0 : index
    %25 = vector.load %arg2[%c0_11, %c0_12] : memref<1152x128xbf16, #tpu.memory_space<vmem>>, vector<1152x128xbf16>
    %cst_13 = arith.constant dense<0.000000e+00> : vector<256x128xf32>
    %26 = tpu.matmul %24, %25, %cst_13 {dimension_numbers = #tpu.dot_dimension_numbers<[1], [0], [0], [1], [0, 0, 1, 1], [], []>} : vector<256x1152xbf16>, vector<1152x128xbf16>, vector<256x128xf32> -> vector<256x128xf32>
    %c0_14 = arith.constant 0 : index
    %c0_15 = arith.constant 0 : index
    %27 = vector.load %arg3[%c0_14, %c0_15] : memref<1x128xf32, #tpu.memory_space<vmem>>, vector<1x128xf32>
    %28 = vector.shape_cast %27 : vector<1x128xf32> to vector<128xf32>
    %29 = vector.shape_cast %28 : vector<128xf32> to vector<1x128xf32>
    %30 = vector.broadcast %29 : vector<1x128xf32> to vector<256x128xf32>
    %31 = arith.addf %26, %30 : vector<256x128xf32>
    %cst_16 = arith.constant 0.000000e+00 : f32
    %32 = vector.broadcast %cst_16 : f32 to vector<256x128xf32>
    %33 = arith.maximumf %31, %32 : vector<256x128xf32>
    %34 = arith.truncf %33 : vector<256x128xf32> to vector<256x128xbf16>
    %c0_17 = arith.constant 0 : index
    %c0_18 = arith.constant 0 : index
    %35 = vector.load %arg4[%c0_17, %c0_18] : memref<128x128xbf16, #tpu.memory_space<vmem>>, vector<128x128xbf16>
    %cst_19 = arith.constant dense<0.000000e+00> : vector<256x128xf32>
    %36 = tpu.matmul %34, %35, %cst_19 {dimension_numbers = #tpu.dot_dimension_numbers<[1], [0], [0], [1], [0, 0, 1, 1], [], []>} : vector<256x128xbf16>, vector<128x128xbf16>, vector<256x128xf32> -> vector<256x128xf32>
    %c0_20 = arith.constant 0 : index
    %c0_21 = arith.constant 0 : index
    %37 = vector.load %arg5[%c0_20, %c0_21] : memref<1x128xf32, #tpu.memory_space<vmem>>, vector<1x128xf32>
    %38 = vector.shape_cast %37 : vector<1x128xf32> to vector<128xf32>
    %39 = vector.shape_cast %38 : vector<128xf32> to vector<1x128xf32>
    %40 = vector.broadcast %39 : vector<1x128xf32> to vector<256x128xf32>
    %41 = arith.addf %36, %40 : vector<256x128xf32>
    %42 = vector.shape_cast %41 : vector<256x128xf32> to vector<1x256x128xf32>
    %c0_22 = arith.constant 0 : index
    %c0_23 = arith.constant 0 : index
    %c0_24 = arith.constant 0 : index
    %43 = vector.load %arg6[%c0_22, %c0_23, %c0_24] : memref<1x256x128xf32, #tpu.memory_space<vmem>>, vector<1x256x128xf32>
    tpu.vector_store %arg6[%c0_22, %c0_23, %c0_24], %42 {strides = array<i32>} : memref<1x256x128xf32, #tpu.memory_space<vmem>>, vector<1x256x128xf32>,
    return
  }
  func.func @transform_0(%arg0: i32) -> (i32, i32, i32, i32) {
    %c0_i32 = arith.constant 0 : i32
    %c0_i32_0 = arith.constant 0 : i32
    %c0_i32_1 = arith.constant 0 : i32
    %c0_i32_2 = arith.constant 0 : i32
    return %arg0, %c0_i32, %c0_i32_0, %c0_i32_1 : i32, i32, i32, i32
  }
  func.func @transform_1(%arg0: i32) -> (i32, i32) {
    %c0_i32 = arith.constant 0 : i32
    %c0_i32_0 = arith.constant 0 : i32
    %c0_i32_1 = arith.constant 0 : i32
    return %c0_i32, %c0_i32_0 : i32, i32
  }
  func.func @transform_2(%arg0: i32) -> (i32, i32) {
    %c0_i32 = arith.constant 0 : i32
    %c0_i32_0 = arith.constant 0 : i32
    %c0_i32_1 = arith.constant 0 : i32
    return %c0_i32, %c0_i32_0 : i32, i32
  }
  func.func @transform_3(%arg0: i32) -> (i32, i32) {
    %c0_i32 = arith.constant 0 : i32
    %c0_i32_0 = arith.constant 0 : i32
    %c0_i32_1 = arith.constant 0 : i32
    return %c0_i32, %c0_i32_0 : i32, i32
  }
  func.func @transform_4(%arg0: i32) -> (i32, i32) {
    %c0_i32 = arith.constant 0 : i32
    %c0_i32_0 = arith.constant 0 : i32
    %c0_i32_1 = arith.constant 0 : i32
    return %c0_i32, %c0_i32_0 : i32, i32
  }
  func.func @transform_5(%arg0: i32) -> (i32, i32, i32) {
    %c0_i32 = arith.constant 0 : i32
    %c0_i32_0 = arith.constant 0 : i32
    %c0_i32_1 = arith.constant 0 : i32
    return %arg0, %c0_i32, %c0_i32_0 : i32, i32, i32
  }
}

</mosaic_0001>

<llo_original>
// kernel: rpn_head_level.1
$region0: #{rpn_head_level.1}
  #allocation0 [shape = 'u32[]', space=smem, size = 0x4, offset = 0x4, fixed_abs, tag = 'smem constant byte address 0x4 - core index']
  #allocation1 [shape = 'u32[144,128]{1,0:T(1,128)}', space=vmem, size = 0x12000, scoped, tag = 'internal scratch']
  #allocation2 [shape = 'bf16[18,18,128]{2,1,0:T(8,128)(2,1)}', space=vmem, size = 0x1b000, scoped, tag = 'scratch operand']
  %s0 = inlined_call_operand.vmem [shape: bf16[2,16,16,128], index: 0, kind: input, shape index: {}]
  %s1 = inlined_call_operand.vmem [shape: bf16[1152,128], index: 1, kind: input, shape index: {}]
  %s2 = inlined_call_operand.vmem [shape: f32[1,128], index: 2, kind: input, shape index: {}]
  %s3 = inlined_call_operand.vmem [shape: bf16[128,128], index: 3, kind: input, shape index: {}]
  %s4 = inlined_call_operand.vmem [shape: f32[1,128], index: 4, kind: input, shape index: {}]
  %s5 = inlined_call_operand.vmem [shape: f32[2,256,128], index: 5, kind: output, shape index: {}]
  %s6 = sld [smem:[#allocation0]]
  $region53: #{rpn_head_level.1} parent=0
    _
  %s8 = ssub.s32 1, %s6
  %s9 = scalar_select 0, %s8, %s6
  loop: start=0, step=1, limit=4
  $region2: #{rpn_head_level.1} parent=0 // loop_pre_header
    _
  $region3: #{rpn_head_level.1} parent=0 // loop_header
    %s11 = sphi 0, %s15
    %p12 = scmp.ge.s32.totalorder %s11, 4
    %s21 = sphi 0, %s23
    %s24 = sphi 0, %s21
    %s25 = sphi 0, %s24
    %s41 = sphi 0, %s25
    %s45 = sphi 0, %s45
    %s47 = sphi 0, %s45
    %s48 = sphi 0, %s47
    %s62 = sphi 0, %s48
    %s66 = sphi 0, %s66
    %s68 = sphi 0, %s66
    %s69 = sphi 0, %s68
    %s83 = sphi 0, %s69
    %s87 = sphi 0, %s87
    %s89 = sphi 0, %s87
    %s90 = sphi 0, %s89
    %s104 = sphi 0, %s90
    %s108 = sphi 0, %s108
    %s110 = sphi 0, %s108
    %s111 = sphi 0, %s110
    %s125 = sphi 0, %s111
    %s131 = sphi 0, %s133
    %s134 = sphi 0, %s131
    %s135 = sphi 0, %s134
    %s151 = sphi 0, %s135
  $region4: #{rpn_head_level.1} parent=0 // loop_header_branch
    %14 = sbr.rel (%p12) target = $region8
  $region5: #{rpn_head_level.1} parent=0 // loop_body
    %s16 = ssub.s32 %s11, 1
    %s17 = ssub.s32 %s11, 2
    %s18 = sadd.s32 %s11, 1
    %s19 = ssub.s32 %s11, %s18
    %p20 = scmp.eq.s32.totalorder %s19, 0
    %s22 = sadd.s32 %s21, 1
    %s23 = scalar_select %p20, %s21, %s22
    %p26 = pneg %p20
    %p27 = scmp.eq.s32.totalorder %s11, 1
    %p28 = por %p26, %p27
    %p29 = scmp.ne.s32.totalorder %s21, %s24
    %p30 = scmp.eq.s32.totalorder %s11, 0
    %p31 = por %p29, %p30
    %p32 = scmp.ne.s32.totalorder %s21, %s24
    %p33 = scmp.eq.s32.totalorder %s16, 1
    %p34 = por %p32, %p33
    %p35 = scmp.ne.s32.totalorder %s24, %s25
    %p36 = scmp.eq.s32.totalorder %s16, 0
    %p37 = por %p35, %p36
    %p38 = scmp.ne.s32.totalorder %s24, %s25
    %p39 = scmp.eq.s32.totalorder %s17, 1
    %p40 = por %p38, %p39
    %p42 = scmp.ne.s32.totalorder %s25, %s41
    %p43 = scmp.eq.s32.totalorder %s17, 0
    %p44 = por %p42, %p43
    %s46 = sadd.s32 %s45, 1
    %p49 = scmp.eq.s32.totalorder %s11, 1
    %p50 = scmp.ne.s32.totalorder %s45, %s47
    %p51 = scmp.eq.s32.totalorder %s11, 0
    %p52 = por %p50, %p51
    %p53 = scmp.ne.s32.totalorder %s45, %s47
    %p54 = scmp.eq.s32.totalorder %s16, 1
    %p55 = por %p53, %p54
    %p56 = scmp.ne.s32.totalorder %s47, %s48
    %p57 = scmp.eq.s32.totalorder %s16, 0
    %p58 = por %p56, %p57
    %p59 = scmp.ne.s32.totalorder %s47, %s48
    %p60 = scmp.eq.s32.totalorder %s17, 1
    %p61 = por %p59, %p60
    %p63 = scmp.ne.s32.totalorder %s48, %s62
    %p64 = scmp.eq.s32.totalorder %s17, 0
    %p65 = por %p63, %p64
    %s67 = sadd.s32 %s66, 1
    %p70 = scmp.eq.s32.totalorder %s11, 1
    %p71 = scmp.ne.s32.totalorder %s66, %s68
    %p72 = scmp.eq.s32.totalorder %s11, 0
    %p73 = por %p71, %p72
    %p74 = scmp.ne.s32.totalorder %s66, %s68
    %p75 = scmp.eq.s32.totalorder %s16, 1
    %p76 = por %p74, %p75
    %p77 = scmp.ne.s32.totalorder %s68, %s69
    %p78 = scmp.eq.s32.totalorder %s16, 0
    %p79 = por %p77, %p78
    %p80 = scmp.ne.s32.totalorder %s68, %s69
    %p81 = scmp.eq.s32.totalorder %s17, 1
    %p82 = por %p80, %p81
    %p84 = scmp.ne.s32.totalorder %s69, %s83
    %p85 = scmp.eq.s32.totalorder %s17, 0
    %p86 = por %p84, %p85
    %s88 = sadd.s32 %s87, 1
    %p91 = scmp.eq.s32.totalorder %s11, 1
    %p92 = scmp.ne.s32.totalorder %s87, %s89
    %p93 = scmp.eq.s32.totalorder %s11, 0
    %p94 = por %p92, %p93
    %p95 = scmp.ne.s32.totalorder %s87, %s89
    %p96 = scmp.eq.s32.totalorder %s16, 1
    %p97 = por %p95, %p96
    %p98 = scmp.ne.s32.totalorder %s89, %s90
    %p99 = scmp.eq.s32.totalorder %s16, 0
    %p100 = por %p98, %p99
    %p101 = scmp.ne.s32.totalorder %s89, %s90
    %p102 = scmp.eq.s32.totalorder %s17, 1
    %p103 = por %p101, %p102
    %p105 = scmp.ne.s32.totalorder %s90, %s104
    %p106 = scmp.eq.s32.totalorder %s17, 0
    %p107 = por %p105, %p106
    %s109 = sadd.s32 %s108, 1
    %p112 = scmp.eq.s32.totalorder %s11, 1
    %p113 = scmp.ne.s32.totalorder %s108, %s110
    %p114 = scmp.eq.s32.totalorder %s11, 0
    %p115 = por %p113, %p114
    %p116 = scmp.ne.s32.totalorder %s108, %s110
    %p117 = scmp.eq.s32.totalorder %s16, 1
    %p118 = por %p116, %p117
    %p119 = scmp.ne.s32.totalorder %s110, %s111
    %p120 = scmp.eq.s32.totalorder %s16, 0
    %p121 = por %p119, %p120
    %p122 = scmp.ne.s32.totalorder %s110, %s111
    %p123 = scmp.eq.s32.totalorder %s17, 1
    %p124 = por %p122, %p123
    %p126 = scmp.ne.s32.totalorder %s111, %s125
    %p127 = scmp.eq.s32.totalorder %s17, 0
    %p128 = por %p126, %p127
    %s129 = ssub.s32 %s11, %s18
    %p130 = scmp.eq.s32.totalorder %s129, 0
    %s132 = sadd.s32 %s131, 1
    %s133 = scalar_select %p130, %s131, %s132
    %p136 = pneg %p130
    %p137 = scmp.eq.s32.totalorder %s11, 1
    %p138 = por %p136, %p137
    %p139 = scmp.ne.s32.totalorder %s131, %s134
    %p140 = scmp.eq.s32.totalorder %s11, 0
    %p141 = por %p139, %p140
    %p142 = scmp.ne.s32.totalorder %s131, %s134
    %p143 = scmp.eq.s32.totalorder %s16, 1
    %p144 = por %p142, %p143
    %p145 = scmp.ne.s32.totalorder %s134, %s135
    %p146 = scmp.eq.s32.totalorder %s16, 0
    %p147 = por %p145, %p146
    %p148 = scmp.ne.s32.totalorder %s134, %s135
    %p149 = scmp.eq.s32.totalorder %s17, 1
    %p150 = por %p148, %p149
    %p152 = scmp.ne.s32.totalorder %s135, %s151
    %p153 = scmp.eq.s32.totalorder %s17, 0
    %p154 = por %p152, %p153
    %p155 = scmp.le.s32.totalorder 1, %s11
    %p156 = scmp.lt.s32.totalorder %s11, 3
    %p157 = pnand %p155, %p156
    %p158 = pneg %p157
    // Predicated region
    $region9: #{rpn_head_level.1} parent=5 // pred_check
      _
    $region10: #{rpn_head_level.1} parent=5 // pred_check_branch
      %160 = sbr.rel (%p157) target = $region12
    $region11: #{rpn_head_level.1} parent=5 // pred_region
      %s161 = ssub.s32 %s11, 1
      // Predicated region
      $region13: #{rpn_head_level.1} parent=11 // pred_check
        %p162 = pneg %p58
      $region14: #{rpn_head_level.1} parent=11 // pred_check_branch
        %164 = sbr.rel (%p162) target = $region16
      $region15: #{rpn_head_level.1} parent=11 // pred_region
        _
      $region16: #{rpn_head_level.1} parent=11 // pred_fallthru
        _
      // Predicated region
      $region17: #{rpn_head_level.1} parent=11 // pred_check
        %p165 = pneg %p79
      $region18: #{rpn_head_level.1} parent=11 // pred_check_branch
        %167 = sbr.rel (%p165) target = $region20
      $region19: #{rpn_head_level.1} parent=11 // pred_region
        _
      $region20: #{rpn_head_level.1} parent=11 // pred_fallthru
        _
      // Predicated region
      $region21: #{rpn_head_level.1} parent=11 // pred_check
        %p168 = pneg %p100
      $region22: #{rpn_head_level.1} parent=11 // pred_check_branch
        %170 = sbr.rel (%p168) target = $region24
      $region23: #{rpn_head_level.1} parent=11 // pred_region
        _
      $region24: #{rpn_head_level.1} parent=11 // pred_fallthru
        _
      // Predicated region
      $region25: #{rpn_head_level.1} parent=11 // pred_check
        %p171 = pneg %p121
      $region26: #{rpn_head_level.1} parent=11 // pred_check_branch
        %173 = sbr.rel (%p171) target = $region28
      $region27: #{rpn_head_level.1} parent=11 // pred_region
        _
      $region28: #{rpn_head_level.1} parent=11 // pred_fallthru
        _
    $region12: #{rpn_head_level.1} parent=5 // pred_fallthru
      _
    %p174 = scmp.lt.s32.totalorder %s11, 2
    // Predicated region
    $region29: #{rpn_head_level.1} parent=5 // pred_check
      %p175 = pneg %p174
    $region30: #{rpn_head_level.1} parent=5 // pred_check_branch
      %177 = sbr.rel (%p175) target = $region32
    $region31: #{rpn_head_level.1} parent=5 // pred_region
      // Predicated region
      $region33: #{rpn_head_level.1} parent=31 // pred_check
        %p178 = pneg %p31
      $region34: #{rpn_head_level.1} parent=31 // pred_check_branch
        %180 = sbr.rel (%p178) target = $region36
      $region35: #{rpn_head_level.1} parent=31 // pred_region
        %p181 = scmp.lt.s32.totalorder %s11, 1
        %s182 = scalar_select %p181, %s11, 1
        %s183 = smul.addr %s182, 32
        %s184 = smul.addr %s183, 4
        %s185 = scalar_lea.vmem %s0, %s184
      $region36: #{rpn_head_level.1} parent=31 // pred_fallthru
        _
    $region32: #{rpn_head_level.1} parent=5 // pred_fallthru
      _
    %p186 = scmp.le.s32.totalorder 1, %s11
    %p187 = scmp.lt.s32.totalorder %s11, 3
    %p188 = pnand %p186, %p187
    %p189 = pneg %p188
    // Predicated region
    $region37: #{rpn_head_level.1} parent=5 // pred_check
      _
    $region38: #{rpn_head_level.1} parent=5 // pred_check_branch
      %191 = sbr.rel (%p188) target = $region40
    $region39: #{rpn_head_level.1} parent=5 // pred_region
      %s192 = ssub.s32 %s11, 1
      %p193 = scmp.lt.s32.totalorder %s16, 1
      %s194 = scalar_select %p193, %s16, 1
      %s195 = smul.addr %s194, 32
      %s196 = smul.addr %s195, 4
      %s197 = scalar_lea.vmem %s0, %s196
      %p198 = pneg %p37
      %p199 = pneg %p34
      %p200 = pneg %p58
      %p201 = pneg %p55
      %p202 = pneg %p79
      %p203 = pneg %p76
      %p204 = pneg %p100
      %p205 = pneg %p97
      %p206 = pneg %p121
      %p207 = pneg %p118
      %p208 = pneg %p147
      %p209 = pneg %p144
      %p210 = scmp.lt.s32.totalorder %s16, 1
      %s211 = scalar_select %p210, %s16, 1
      %s212 = smul.addr %s211, 32
      %s213 = smul.addr %s212, 8
      %s214 = scalar_lea.vmem %s5, %s213
      %p215 = scmp.lt.s32.totalorder %s16, 1
      %s216 = scalar_select %p215, %s16, 1
      %s217 = smul.addr %s216, 32
      %s218 = smul.addr %s217, 4
      %s219 = scalar_lea.vmem %s0, %s218
      %p220 = scmp.lt.s32.totalorder %s16, 1
      %s221 = scalar_select %p220, %s16, 1
      %s222 = smul.addr %s221, 32
      %s223 = smul.addr %s222, 8
      %s224 = scalar_lea.vmem %s5, %s223
      %226 = vst [vmem:[#allocation2] sm:$0xf] 0
      %227 = vst [vmem:[#allocation2 + $0x4] sm:$0xf] 0
      %228 = vst [vmem:[#allocation2 + $0x8] sm:$0x1] 0
      %229 = vst [vmem:[#allocation2 + $0xc] sm:$0xf] 0
      %230 = vst [vmem:[#allocation2 + $0x10] sm:$0xf] 0
      %231 = vst [vmem:[#allocation2 + $0x14] sm:$0x1] 0
      %232 = vst [vmem:[#allocation2 + $0x18] sm:$0xf] 0
      %233 = vst [vmem:[#allocation2 + $0x1c] sm:$0xf] 0
      %234 = vst [vmem:[#allocation2 + $0x20] sm:$0x1] 0
      %235 = vst [vmem:[#allocation2 + $0x24] sm:$0xf] 0
      %236 = vst [vmem:[#allocation2 + $0x28] sm:$0xf] 0
      %237 = vst [vmem:[#allocation2 + $0x2c] sm:$0x1] 0
      %238 = vst [vmem:[#allocation2 + $0x30] sm:$0xf] 0
      %239 = vst [vmem:[#allocation2 + $0x34] sm:$0xf] 0
      %240 = vst [vmem:[#allocation2 + $0x38] sm:$0x1] 0
      %241 = vst [vmem:[#allocation2 + $0x3c] sm:$0xf] 0
      %242 = vst [vmem:[#allocation2 + $0x40] sm:$0xf] 0
      %243 = vst [vmem:[#allocation2 + $0x44] sm:$0x1] 0
      %244 = vst [vmem:[#allocation2 + $0x48] sm:$0xf] 0
      %245 = vst [vmem:[#allocation2 + $0x4c] sm:$0xf] 0
      %246 = vst [vmem:[#allocation2 + $0x50] sm:$0x1] 0
      %247 = vst [vmem:[#allocation2 + $0x54] sm:$0xf] 0
      %248 = vst [vmem:[#allocation2 + $0x58] sm:$0xf] 0
      %249 = vst [vmem:[#allocation2 + $0x5c] sm:$0x1] 0
      %250 = vst [vmem:[#allocation2 + $0x60] sm:$0xf] 0
      %251 = vst [vmem:[#allocation2 + $0x64] sm:$0xf] 0
      %252 = vst [vmem:[#allocation2 + $0x68] sm:$0x1] 0
      %253 = vst [vmem:[#allocation2 + $0x6c] sm:$0xf] 0
      %254 = vst [vmem:[#allocation2 + $0x70] sm:$0xf] 0
      %255 = vst [vmem:[#allocation2 + $0x74] sm:$0x1] 0
      %256 = vst [vmem:[#allocation2 + $0x78] sm:$0xf] 0
      %257 = vst [vmem:[#allocation2 + $0x7c] sm:$0xf] 0
      %258 = vst [vmem:[#allocation2 + $0x80] sm:$0x1] 0
      %259 = vst [vmem:[#allocation2 + $0x84] sm:$0xf] 0
      %260 = vst [vmem:[#allocation2 + $0x88] sm:$0xf] 0
      %261 = vst [vmem:[#allocation2 + $0x8c] sm:$0x1] 0
      %262 = vst [vmem:[#allocation2 + $0x90] sm:$0xf] 0
      %263 = vst [vmem:[#allocation2 + $0x94] sm:$0xf] 0
      %264 = vst [vmem:[#allocation2 + $0x98] sm:$0x1] 0
      %265 = vst [vmem:[#allocation2 + $0x9c] sm:$0xf] 0
      %266 = vst [vmem:[#allocation2 + $0xa0] sm:$0xf] 0
      %267 = vst [vmem:[#allocation2 + $0xa4] sm:$0x1] 0
      %268 = vst [vmem:[#allocation2 + $0xa8] sm:$0xf] 0
      %269 = vst [vmem:[#allocation2 + $0xac] sm:$0xf] 0
      %270 = vst [vmem:[#allocation2 + $0xb0] sm:$0x1] 0
      %271 = vst [vmem:[#allocation2 + $0xb4] sm:$0xf] 0
      %272 = vst [vmem:[#allocation2 + $0xb8] sm:$0xf] 0
      %273 = vst [vmem:[#allocation2 + $0xbc] sm:$0x1] 0
      %274 = vst [vmem:[#allocation2 + $0xc0] sm:$0xf] 0
      %275 = vst [vmem:[#allocation2 + $0xc4] sm:$0xf] 0
      %276 = vst [vmem:[#allocation2 + $0xc8] sm:$0x1] 0
      %277 = vst [vmem:[#allocation2 + $0xcc] sm:$0xf] 0
      %278 = vst [vmem:[#allocation2 + $0xd0] sm:$0xf] 0
      %279 = vst [vmem:[#allocation2 + $0xd4] sm:$0x1] 0
      %v280 = vld [vmem:[%s219] sm:$0xf]
      %v281 = vld [vmem:[%s219 + $0x4] sm:$0xf]
      %v282 = vld [vmem:[%s219 + $0x8] sm:$0xf]
      %v283 = vld [vmem:[%s219 + $0xc] sm:$0xf]
      %v284 = vld [vmem:[%s219 + $0x10] sm:$0xf]
      %v285 = vld [vmem:[%s219 + $0x14] sm:$0xf]
      %v286 = vld [vmem:[%s219 + $0x18] sm:$0xf]
      %v287 = vld [vmem:[%s219 + $0x1c] sm:$0xf]
      %v288 = vld [vmem:[%s219 + $0x20] sm:$0xf]
      %v289 = vld [vmem:[%s219 + $0x24] sm:$0xf]
      %v290 = vld [vmem:[%s219 + $0x28] sm:$0xf]
      %v291 = vld [vmem:[%s219 + $0x2c] sm:$0xf]
      %v292 = vld [vmem:[%s219 + $0x30] sm:$0xf]
      %v293 = vld [vmem:[%s219 + $0x34] sm:$0xf]
      %v294 = vld [vmem:[%s219 + $0x38] sm:$0xf]
      %v295 = vld [vmem:[%s219 + $0x3c] sm:$0xf]
      %v296 = vld [vmem:[%s219 + $0x40] sm:$0xf]
      %v297 = vld [vmem:[%s219 + $0x44] sm:$0xf]
      %v298 = vld [vmem:[%s219 + $0x48] sm:$0xf]
      %v299 = vld [vmem:[%s219 + $0x4c] sm:$0xf]
      %v300 = vld [vmem:[%s219 + $0x50] sm:$0xf]
      %v301 = vld [vmem:[%s219 + $0x54] sm:$0xf]
      %v302 = vld [vmem:[%s219 + $0x58] sm:$0xf]
      %v303 = vld [vmem:[%s219 + $0x5c] sm:$0xf]
      %v304 = vld [vmem:[%s219 + $0x60] sm:$0xf]
      %v305 = vld [vmem:[%s219 + $0x64] sm:$0xf]
      %v306 = vld [vmem:[%s219 + $0x68] sm:$0xf]
      %v307 = vld [vmem:[%s219 + $0x6c] sm:$0xf]
      %v308 = vld [vmem:[%s219 + $0x70] sm:$0xf]
      %v309 = vld [vmem:[%s219 + $0x74] sm:$0xf]
      %v310 = vld [vmem:[%s219 + $0x78] sm:$0xf]
      %v311 = vld [vmem:[%s219 + $0x7c] sm:$0xf]
      %vm312 = vsmask.f32 256
      %vm313 = vsmask.f32 4368
      %vm314 = vmor %vm312, %vm313
      %v316 = vshrl.u32 %v280, 16
      %v318 = vrot.slane %v316, 7
      %v319 = vshll.u32 %v280, 16
      %v321 = vor.u32 %v318, %v319
      %v322 = vrot.slane %v318, 4
      %v324 = vshrl.u32 %v281, 16
      %v326 = vrot.slane %v324, 7
      %v327 = vshll.u32 %v281, 16
      %v329 = vor.u32 %v326, %v327
      %v330 = vsel %vm314, %v322, %v329
      %v331 = vrot.slane %v326, 4
      %v333 = vshrl.u32 %v282, 16
      %v335 = vrot.slane %v333, 7
      %v336 = vshll.u32 %v282, 16
      %v338 = vor.u32 %v335, %v336
      %v339 = vrot.slane %v335, 4
      %v341 = vshrl.u32 %v283, 16
      %v343 = vrot.slane %v341, 7
      %v344 = vshll.u32 %v283, 16
      %v346 = vor.u32 %v343, %v344
      %v347 = vsel %vm314, %v339, %v346
      %v348 = vrot.slane %v343, 4
      %v350 = vshrl.u32 %v284, 16
      %v352 = vrot.slane %v350, 7
      %v353 = vshll.u32 %v284, 16
      %v355 = vor.u32 %v352, %v353
      %v356 = vrot.slane %v352, 4
      %v358 = vshrl.u32 %v285, 16
      %v360 = vrot.slane %v358, 7
      %v361 = vshll.u32 %v285, 16
      %v363 = vor.u32 %v360, %v361
      %v364 = vsel %vm314, %v356, %v363
      %v365 = vrot.slane %v360, 4
      %v367 = vshrl.u32 %v286, 16
      %v369 = vrot.slane %v367, 7
      %v370 = vshll.u32 %v286, 16
      %v372 = vor.u32 %v369, %v370
      %v373 = vrot.slane %v369, 4
      %v375 = vshrl.u32 %v287, 16
      %v377 = vrot.slane %v375, 7
      %v378 = vshll.u32 %v287, 16
      %v380 = vor.u32 %v377, %v378
      %v381 = vsel %vm314, %v373, %v380
      %v382 = vrot.slane %v377, 4
      %v384 = vshrl.u32 %v288, 16
      %v386 = vrot.slane %v384, 7
      %v387 = vshll.u32 %v288, 16
      %v389 = vor.u32 %v386, %v387
      %v390 = vrot.slane %v386, 4
      %v392 = vshrl.u32 %v289, 16
      %v394 = vrot.slane %v392, 7
      %v395 = vshll.u32 %v289, 16
      %v397 = vor.u32 %v394, %v395
      %v398 = vsel %vm314, %v390, %v397
      %v399 = vrot.slane %v394, 4
      %v401 = vshrl.u32 %v290, 16
      %v403 = vrot.slane %v401, 7
      %v404 = vshll.u32 %v290, 16
      %v406 = vor.u32 %v403, %v404
      %v407 = vrot.slane %v403, 4
      %v409 = vshrl.u32 %v291, 16
      %v411 = vrot.slane %v409, 7
      %v412 = vshll.u32 %v291, 16
      %v414 = vor.u32 %v411, %v412
      %v415 = vsel %vm314, %v407, %v414
      %v416 = vrot.slane %v411, 4
      %v418 = vshrl.u32 %v292, 16
      %v420 = vrot.slane %v418, 7
      %v421 = vshll.u32 %v292, 16
      %v423 = vor.u32 %v420, %v421
      %v424 = vrot.slane %v420, 4
      %v426 = vshrl.u32 %v293, 16
      %v428 = vrot.slane %v426, 7
      %v429 = vshll.u32 %v293, 16
      %v431 = vor.u32 %v428, %v429
      %v432 = vsel %vm314, %v424, %v431
      %v433 = vrot.slane %v428, 4
      %v435 = vshrl.u32 %v294, 16
      %v437 = vrot.slane %v435, 7
      %v438 = vshll.u32 %v294, 16
      %v440 = vor.u32 %v437, %v438
      %v441 = vrot.slane %v437, 4
      %v443 = vshrl.u32 %v295, 16
      %v445 = vrot.slane %v443, 7
      %v446 = vshll.u32 %v295, 16
      %v448 = vor.u32 %v445, %v446
      %v449 = vsel %vm314, %v441, %v448
      %v450 = vrot.slane %v445, 4
      %v452 = vshrl.u32 %v296, 16
      %v454 = vrot.slane %v452, 7
      %v455 = vshll.u32 %v296, 16
      %v457 = vor.u32 %v454, %v455
      %v458 = vrot.slane %v454, 4
      %v460 = vshrl.u32 %v297, 16
      %v462 = vrot.slane %v460, 7
      %v463 = vshll.u32 %v297, 16
      %v465 = vor.u32 %v462, %v463
      %v466 = vsel %vm314, %v458, %v465
      %v467 = vrot.slane %v462, 4
      %v469 = vshrl.u32 %v298, 16
      %v471 = vrot.slane %v469, 7
      %v472 = vshll.u32 %v298, 16
      %v474 = vor.u32 %v471, %v472
      %v475 = vrot.slane %v471, 4
      %v477 = vshrl.u32 %v299, 16
      %v479 = vrot.slane %v477, 7
      %v480 = vshll.u32 %v299, 16
      %v482 = vor.u32 %v479, %v480
      %v483 = vsel %vm314, %v475, %v482
      %v484 = vrot.slane %v479, 4
      %v486 = vshrl.u32 %v300, 16
      %v488 = vrot.slane %v486, 7
      %v489 = vshll.u32 %v300, 16
      %v491 = vor.u32 %v488, %v489
      %v492 = vrot.slane %v488, 4
      %v494 = vshrl.u32 %v301, 16
      %v496 = vrot.slane %v494, 7
      %v497 = vshll.u32 %v301, 16
      %v499 = vor.u32 %v496, %v497
      %v500 = vsel %vm314, %v492, %v499
      %v501 = vrot.slane %v496, 4
      %v503 = vshrl.u32 %v302, 16
      %v505 = vrot.slane %v503, 7
      %v506 = vshll.u32 %v302, 16
      %v508 = vor.u32 %v505, %v506
      %v509 = vrot.slane %v505, 4
      %v511 = vshrl.u32 %v303, 16
      %v513 = vrot.slane %v511, 7
      %v514 = vshll.u32 %v303, 16
      %v516 = vor.u32 %v513, %v514
      %v517 = vsel %vm314, %v509, %v516
      %v518 = vrot.slane %v513, 4
      %v520 = vshrl.u32 %v304, 16
      %v522 = vrot.slane %v520, 7
      %v523 = vshll.u32 %v304, 16
      %v525 = vor.u32 %v522, %v523
      %v526 = vrot.slane %v522, 4
      %v528 = vshrl.u32 %v305, 16
      %v530 = vrot.slane %v528, 7
      %v531 = vshll.u32 %v305, 16
      %v533 = vor.u32 %v530, %v531
      %v534 = vsel %vm314, %v526, %v533
      %v535 = vrot.slane %v530, 4
      %v537 = vshrl.u32 %v306, 16
      %v539 = vrot.slane %v537, 7
      %v540 = vshll.u32 %v306, 16
      %v542 = vor.u32 %v539, %v540
      %v543 = vrot.slane %v539, 4
      %v545 = vshrl.u32 %v307, 16
      %v547 = vrot.slane %v545, 7
      %v548 = vshll.u32 %v307, 16
      %v550 = vor.u32 %v547, %v548
      %v551 = vsel %vm314, %v543, %v550
      %v552 = vrot.slane %v547, 4
      %v554 = vshrl.u32 %v308, 16
      %v556 = vrot.slane %v554, 7
      %v557 = vshll.u32 %v308, 16
      %v559 = vor.u32 %v556, %v557
      %v560 = vrot.slane %v556, 4
      %v562 = vshrl.u32 %v309, 16
      %v564 = vrot.slane %v562, 7
      %v565 = vshll.u32 %v309, 16
      %v567 = vor.u32 %v564, %v565
      %v568 = vsel %vm314, %v560, %v567
      %v569 = vrot.slane %v564, 4
      %v571 = vshrl.u32 %v310, 16
      %v573 = vrot.slane %v571, 7
      %v574 = vshll.u32 %v310, 16
      %v576 = vor.u32 %v573, %v574
      %v577 = vrot.slane %v573, 4
      %v579 = vshrl.u32 %v311, 16
      %v581 = vrot.slane %v579, 7
      %v582 = vshll.u32 %v311, 16
      %v584 = vor.u32 %v581, %v582
      %v585 = vsel %vm314, %v577, %v584
      %v586 = vrot.slane %v581, 4
      %s635 = scalar_lea.vmem [#allocation2], 12
      %vm636 = vcmask 1043456
      %vm637 = vsmask.f32 7938
      %vm638 = vmand %vm636, %vm637
      %v639 = vld [vmem:[%s635] sm:$0xf]
      %v640 = vsel %vm638, %v321, %v639
      %641 = vst [vmem:[%s635] sm:$0xf] %v640
      %642 = vst [vmem:[%s635 + $0x4] sm:$0xf] %v330
      %vm643 = vcmask 1040384
      %vm644 = vmand %vm643, %vm312
      %v645 = vld [vmem:[%s635 + $0x8] sm:$0x1]
      %v646 = vsel %vm644, %v331, %v645
      %647 = vst [vmem:[%s635 + $0x8] sm:$0x1] %v646
      %v648 = vld [vmem:[%s635 + $0xc] sm:$0xf]
      %v649 = vsel %vm638, %v338, %v648
      %650 = vst [vmem:[%s635 + $0xc] sm:$0xf] %v649
      %651 = vst [vmem:[%s635 + $0x10] sm:$0xf] %v347
      %v652 = vld [vmem:[%s635 + $0x14] sm:$0x1]
      %v653 = vsel %vm644, %v348, %v652
      %654 = vst [vmem:[%s635 + $0x14] sm:$0x1] %v653
      %v655 = vld [vmem:[%s635 + $0x18] sm:$0xf]
      %v656 = vsel %vm638, %v355, %v655
      %657 = vst [vmem:[%s635 + $0x18] sm:$0xf] %v656
      %658 = vst [vmem:[%s635 + $0x1c] sm:$0xf] %v364
      %v659 = vld [vmem:[%s635 + $0x20] sm:$0x1]
      %v660 = vsel %vm644, %v365, %v659
      %661 = vst [vmem:[%s635 + $0x20] sm:$0x1] %v660
      %v662 = vld [vmem:[%s635 + $0x24] sm:$0xf]
      %v663 = vsel %vm638, %v372, %v662
      %664 = vst [vmem:[%s635 + $0x24] sm:$0xf] %v663
      %665 = vst [vmem:[%s635 + $0x28] sm:$0xf] %v381
      %v666 = vld [vmem:[%s635 + $0x2c] sm:$0x1]
      %v667 = vsel %vm644, %v382, %v666
      %668 = vst [vmem:[%s635 + $0x2c] sm:$0x1] %v667
      %v669 = vld [vmem:[%s635 + $0x30] sm:$0xf]
      %v670 = vsel %vm638, %v389, %v669
      %671 = vst [vmem:[%s635 + $0x30] sm:$0xf] %v670
      %672 = vst [vmem:[%s635 + $0x34] sm:$0xf] %v398
      %v673 = vld [vmem:[%s635 + $0x38] sm:$0x1]
      %v674 = vsel %vm644, %v399, %v673
      %675 = vst [vmem:[%s635 + $0x38] sm:$0x1] %v674
      %v676 = vld [vmem:[%s635 + $0x3c] sm:$0xf]
      %v677 = vsel %vm638, %v406, %v676
      %678 = vst [vmem:[%s635 + $0x3c] sm:$0xf] %v677
      %679 = vst [vmem:[%s635 + $0x40] sm:$0xf] %v415
      %v680 = vld [vmem:[%s635 + $0x44] sm:$0x1]
      %v681 = vsel %vm644, %v416, %v680
      %682 = vst [vmem:[%s635 + $0x44] sm:$0x1] %v681
      %v683 = vld [vmem:[%s635 + $0x48] sm:$0xf]
      %v684 = vsel %vm638, %v423, %v683
      %685 = vst [vmem:[%s635 + $0x48] sm:$0xf] %v684
      %686 = vst [vmem:[%s635 + $0x4c] sm:$0xf] %v432
      %v687 = vld [vmem:[%s635 + $0x50] sm:$0x1]
      %v688 = vsel %vm644, %v433, %v687
      %689 = vst [vmem:[%s635 + $0x50] sm:$0x1] %v688
      %v690 = vld [vmem:[%s635 + $0x54] sm:$0xf]
      %v691 = vsel %vm638, %v440, %v690
      %692 = vst [vmem:[%s635 + $0x54] sm:$0xf] %v691
      %693 = vst [vmem:[%s635 + $0x58] sm:$0xf] %v449
      %v694 = vld [vmem:[%s635 + $0x5c] sm:$0x1]
      %v695 = vsel %vm644, %v450, %v694
      %696 = vst [vmem:[%s635 + $0x5c] sm:$0x1] %v695
      %v697 = vld [vmem:[%s635 + $0x60] sm:$0xf]
      %v698 = vsel %vm638, %v457, %v697
      %699 = vst [vmem:[%s635 + $0x60] sm:$0xf] %v698
      %700 = vst [vmem:[%s635 + $0x64] sm:$0xf] %v466
      %v701 = vld [vmem:[%s635 + $0x68] sm:$0x1]
      %v702 = vsel %vm644, %v467, %v701
      %703 = vst [vmem:[%s635 + $0x68] sm:$0x1] %v702
      %v704 = vld [vmem:[%s635 + $0x6c] sm:$0xf]
      %v705 = vsel %vm638, %v474, %v704
      %706 = vst [vmem:[%s635 + $0x6c] sm:$0xf] %v705
      %707 = vst [vmem:[%s635 + $0x70] sm:$0xf] %v483
      %v708 = vld [vmem:[%s635 + $0x74] sm:$0x1]
      %v709 = vsel %vm644, %v484, %v708
      %710 = vst [vmem:[%s635 + $0x74] sm:$0x1] %v709
      %v711 = vld [vmem:[%s635 + $0x78] sm:$0xf]
      %v712 = vsel %vm638, %v491, %v711
      %713 = vst [vmem:[%s635 + $0x78] sm:$0xf] %v712
      %714 = vst [vmem:[%s635 + $0x7c] sm:$0xf] %v500
      %v715 = vld [vmem:[%s635 + $0x80] sm:$0x1]
      %v716 = vsel %vm644, %v501, %v715
      %717 = vst [vmem:[%s635 + $0x80] sm:$0x1] %v716
      %v718 = vld [vmem:[%s635 + $0x84] sm:$0xf]
      %v719 = vsel %vm638, %v508, %v718
      %720 = vst [vmem:[%s635 + $0x84] sm:$0xf] %v719
      %721 = vst [vmem:[%s635 + $0x88] sm:$0xf] %v517
      %v722 = vld [vmem:[%s635 + $0x8c] sm:$0x1]
      %v723 = vsel %vm644, %v518, %v722
      %724 = vst [vmem:[%s635 + $0x8c] sm:$0x1] %v723
      %v725 = vld [vmem:[%s635 + $0x90] sm:$0xf]
      %v726 = vsel %vm638, %v525, %v725
      %727 = vst [vmem:[%s635 + $0x90] sm:$0xf] %v726
      %728 = vst [vmem:[%s635 + $0x94] sm:$0xf] %v534
      %v729 = vld [vmem:[%s635 + $0x98] sm:$0x1]
      %v730 = vsel %vm644, %v535, %v729
      %731 = vst [vmem:[%s635 + $0x98] sm:$0x1] %v730
      %v732 = vld [vmem:[%s635 + $0x9c] sm:$0xf]
      %v733 = vsel %vm638, %v542, %v732
      %734 = vst [vmem:[%s635 + $0x9c] sm:$0xf] %v733
      %735 = vst [vmem:[%s635 + $0xa0] sm:$0xf] %v551
      %v736 = vld [vmem:[%s635 + $0xa4] sm:$0x1]
      %v737 = vsel %vm644, %v552, %v736
      %738 = vst [vmem:[%s635 + $0xa4] sm:$0x1] %v737
      %v739 = vld [vmem:[%s635 + $0xa8] sm:$0xf]
      %v740 = vsel %vm638, %v559, %v739
      %741 = vst [vmem:[%s635 + $0xa8] sm:$0xf] %v740
      %742 = vst [vmem:[%s635 + $0xac] sm:$0xf] %v568
      %v743 = vld [vmem:[%s635 + $0xb0] sm:$0x1]
      %v744 = vsel %vm644, %v569, %v743
      %745 = vst [vmem:[%s635 + $0xb0] sm:$0x1] %v744
      %v746 = vld [vmem:[%s635 + $0xb4] sm:$0xf]
      %v747 = vsel %vm638, %v576, %v746
      %748 = vst [vmem:[%s635 + $0xb4] sm:$0xf] %v747
      %749 = vst [vmem:[%s635 + $0xb8] sm:$0xf] %v585
      %v750 = vld [vmem:[%s635 + $0xbc] sm:$0x1]
      %v751 = vsel %vm644, %v586, %v750
      %752 = vst [vmem:[%s635 + $0xbc] sm:$0x1] %v751
      %v753 = vld [vmem:[#allocation2] sm:$0xf]
      %v754 = vld [vmem:[#allocation2 + $0x4] sm:$0xf]
      %v755 = vld [vmem:[#allocation2 + $0x8] sm:$0x1]
      %v756 = vld [vmem:[#allocation2 + $0xc] sm:$0xf]
      %v757 = vld [vmem:[#allocation2 + $0x10] sm:$0xf]
      %v758 = vld [vmem:[#allocation2 + $0x14] sm:$0x1]
      %v759 = vld [vmem:[#allocation2 + $0x18] sm:$0xf]
      %v760 = vld [vmem:[#allocation2 + $0x1c] sm:$0xf]
      %v761 = vld [vmem:[#allocation2 + $0x20] sm:$0x1]
      %v762 = vld [vmem:[#allocation2 + $0x24] sm:$0xf]
      %v763 = vld [vmem:[#allocation2 + $0x28] sm:$0xf]
      %v764 = vld [vmem:[#allocation2 + $0x2c] sm:$0x1]
      %v765 = vld [vmem:[#allocation2 + $0x30] sm:$0xf]
      %v766 = vld [vmem:[#allocation2 + $0x34] sm:$0xf]
      %v767 = vld [vmem:[#allocation2 + $0x38] sm:$0x1]
      %v768 = vld [vmem:[#allocation2 + $0x3c] sm:$0xf]
      %v769 = vld [vmem:[#allocation2 + $0x40] sm:$0xf]
      %v770 = vld [vmem:[#allocation2 + $0x44] sm:$0x1]
      %v771 = vld [vmem:[#allocation2 + $0x48] sm:$0xf]
      %v772 = vld [vmem:[#allocation2 + $0x4c] sm:$0xf]
      %v773 = vld [vmem:[#allocation2 + $0x50] sm:$0x1]
      %v774 = vld [vmem:[#allocation2 + $0x54] sm:$0xf]
      %v775 = vld [vmem:[#allocation2 + $0x58] sm:$0xf]
      %v776 = vld [vmem:[#allocation2 + $0x5c] sm:$0x1]
      %v777 = vld [vmem:[#allocation2 + $0x60] sm:$0xf]
      %v778 = vld [vmem:[#allocation2 + $0x64] sm:$0xf]
      %v779 = vld [vmem:[#allocation2 + $0x68] sm:$0x1]
      %v780 = vld [vmem:[#allocation2 + $0x6c] sm:$0xf]
      %v781 = vld [vmem:[#allocation2 + $0x70] sm:$0xf]
      %v782 = vld [vmem:[#allocation2 + $0x74] sm:$0x1]
      %v783 = vld [vmem:[#allocation2 + $0x78] sm:$0xf]
      %v784 = vld [vmem:[#allocation2 + $0x7c] sm:$0xf]
      %v785 = vld [vmem:[#allocation2 + $0x80] sm:$0x1]
      %v786 = vld [vmem:[#allocation2 + $0x84] sm:$0xf]
      %v787 = vld [vmem:[#allocation2 + $0x88] sm:$0xf]
      %v788 = vld [vmem:[#allocation2 + $0x8c] sm:$0x1]
      %v789 = vld [vmem:[#allocation2 + $0x90] sm:$0xf]
      %v790 = vld [vmem:[#allocation2 + $0x94] sm:$0xf]
      %v791 = vld [vmem:[#allocation2 + $0x98] sm:$0x1]
      %v792 = vld [vmem:[#allocation2 + $0x9c] sm:$0xf]
      %v793 = vld [vmem:[#allocation2 + $0xa0] sm:$0xf]
      %v794 = vld [vmem:[#allocation2 + $0xa4] sm:$0x1]
      %v795 = vld [vmem:[#allocation2 + $0xa8] sm:$0xf]
      %v796 = vld [vmem:[#allocation2 + $0xac] sm:$0xf]
      %v797 = vld [vmem:[#allocation2 + $0xb0] sm:$0x1]
      %v798 = vld [vmem:[#allocation2 + $0xb4] sm:$0xf]
      %v799 = vld [vmem:[#allocation2 + $0xb8] sm:$0xf]
      %v800 = vld [vmem:[#allocation2 + $0xbc] sm:$0x1]
      %v801 = vld [vmem:[#allocation2 + $0xc0] sm:$0xf]
      %v802 = vld [vmem:[#allocation2 + $0xc4] sm:$0xf]
      %v803 = vld [vmem:[#allocation2 + $0xc8] sm:$0x1]
      %v804 = vld [vmem:[#allocation2 + $0xcc] sm:$0xf]
      %v805 = vld [vmem:[#allocation2 + $0xd0] sm:$0xf]
      %v806 = vld [vmem:[#allocation2 + $0xd4] sm:$0x1]
      %vm807 = vsmask.f32 3328
      %vm808 = vsmask.f32 7440
      %vm809 = vmor %vm807, %vm808
      %v811 = vshrl.u32 %v753, 16
      %v813 = vrot.slane %v811, 4
      %v814 = vshll.u32 %v753, 16
      %v816 = vrot.slane %v814, 5
      %v817 = vor.u32 %v813, %v816
      %v818 = vrot.slane %v817, 4
      %v820 = vshll.u32 %v754, 16
      %v822 = vrot.slane %v820, 5
      %v823 = vsel %vm809, %v818, %v822
      %v824 = vshrl.u32 %v754, 16
      %v826 = vrot.slane %v824, 4
      %v827 = vor.u32 %v826, %v822
      %v828 = vrot.slane %v827, 4
      %v830 = vshll.u32 %v755, 16
      %v832 = vrot.slane %v830, 5
      %v833 = vsel %vm809, %v828, %v832
      %v835 = vshrl.u32 %v756, 16
      %v837 = vrot.slane %v835, 4
      %v838 = vshll.u32 %v756, 16
      %v840 = vrot.slane %v838, 5
      %v841 = vor.u32 %v837, %v840
      %v842 = vrot.slane %v841, 4
      %v844 = vshll.u32 %v757, 16
      %v846 = vrot.slane %v844, 5
      %v847 = vsel %vm809, %v842, %v846
      %v848 = vshrl.u32 %v757, 16
      %v850 = vrot.slane %v848, 4
      %v851 = vor.u32 %v850, %v846
      %v852 = vrot.slane %v851, 4
      %v854 = vshll.u32 %v758, 16
      %v856 = vrot.slane %v854, 5
      %v857 = vsel %vm809, %v852, %v856
      %v859 = vshrl.u32 %v759, 16
      %v861 = vrot.slane %v859, 4
      %v862 = vshll.u32 %v759, 16
      %v864 = vrot.slane %v862, 5
      %v865 = vor.u32 %v861, %v864
      %v866 = vrot.slane %v865, 4
      %v868 = vshll.u32 %v760, 16
      %v870 = vrot.slane %v868, 5
      %v871 = vsel %vm809, %v866, %v870
      %v872 = vshrl.u32 %v760, 16
      %v874 = vrot.slane %v872, 4
      %v875 = vor.u32 %v874, %v870
      %v876 = vrot.slane %v875, 4
      %v878 = vshll.u32 %v761, 16
      %v880 = vrot.slane %v878, 5
      %v881 = vsel %vm809, %v876, %v880
      %v883 = vshrl.u32 %v762, 16
      %v885 = vrot.slane %v883, 4
      %v886 = vshll.u32 %v762, 16
      %v888 = vrot.slane %v886, 5
      %v889 = vor.u32 %v885, %v888
      %v890 = vrot.slane %v889, 4
      %v892 = vshll.u32 %v763, 16
      %v894 = vrot.slane %v892, 5
      %v895 = vsel %vm809, %v890, %v894
      %v896 = vshrl.u32 %v763, 16
      %v898 = vrot.slane %v896, 4
      %v899 = vor.u32 %v898, %v894
      %v900 = vrot.slane %v899, 4
      %v902 = vshll.u32 %v764, 16
      %v904 = vrot.slane %v902, 5
      %v905 = vsel %vm809, %v900, %v904
      %v907 = vshrl.u32 %v765, 16
      %v909 = vrot.slane %v907, 4
      %v910 = vshll.u32 %v765, 16
      %v912 = vrot.slane %v910, 5
      %v913 = vor.u32 %v909, %v912
      %v914 = vrot.slane %v913, 4
      %v916 = vshll.u32 %v766, 16
      %v918 = vrot.slane %v916, 5
      %v919 = vsel %vm809, %v914, %v918
      %v920 = vshrl.u32 %v766, 16
      %v922 = vrot.slane %v920, 4
      %v923 = vor.u32 %v922, %v918
      %v924 = vrot.slane %v923, 4
      %v926 = vshll.u32 %v767, 16
      %v928 = vrot.slane %v926, 5
      %v929 = vsel %vm809, %v924, %v928
      %v931 = vshrl.u32 %v768, 16
      %v933 = vrot.slane %v931, 4
      %v934 = vshll.u32 %v768, 16
      %v936 = vrot.slane %v934, 5
      %v937 = vor.u32 %v933, %v936
      %v938 = vrot.slane %v937, 4
      %v940 = vshll.u32 %v769, 16
      %v942 = vrot.slane %v940, 5
      %v943 = vsel %vm809, %v938, %v942
      %v944 = vshrl.u32 %v769, 16
      %v946 = vrot.slane %v944, 4
      %v947 = vor.u32 %v946, %v942
      %v948 = vrot.slane %v947, 4
      %v950 = vshll.u32 %v770, 16
      %v952 = vrot.slane %v950, 5
      %v953 = vsel %vm809, %v948, %v952
      %v955 = vshrl.u32 %v771, 16
      %v957 = vrot.slane %v955, 4
      %v958 = vshll.u32 %v771, 16
      %v960 = vrot.slane %v958, 5
      %v961 = vor.u32 %v957, %v960
      %v962 = vrot.slane %v961, 4
      %v964 = vshll.u32 %v772, 16
      %v966 = vrot.slane %v964, 5
      %v967 = vsel %vm809, %v962, %v966
      %v968 = vshrl.u32 %v772, 16
      %v970 = vrot.slane %v968, 4
      %v971 = vor.u32 %v970, %v966
      %v972 = vrot.slane %v971, 4
      %v974 = vshll.u32 %v773, 16
      %v976 = vrot.slane %v974, 5
      %v977 = vsel %vm809, %v972, %v976
      %v979 = vshrl.u32 %v774, 16
      %v981 = vrot.slane %v979, 4
      %v982 = vshll.u32 %v774, 16
      %v984 = vrot.slane %v982, 5
      %v985 = vor.u32 %v981, %v984
      %v986 = vrot.slane %v985, 4
      %v988 = vshll.u32 %v775, 16
      %v990 = vrot.slane %v988, 5
      %v991 = vsel %vm809, %v986, %v990
      %v992 = vshrl.u32 %v775, 16
      %v994 = vrot.slane %v992, 4
      %v995 = vor.u32 %v994, %v990
      %v996 = vrot.slane %v995, 4
      %v998 = vshll.u32 %v776, 16
      %v1000 = vrot.slane %v998, 5
      %v1001 = vsel %vm809, %v996, %v1000
      %v1003 = vshrl.u32 %v777, 16
      %v1005 = vrot.slane %v1003, 4
      %v1006 = vshll.u32 %v777, 16
      %v1008 = vrot.slane %v1006, 5
      %v1009 = vor.u32 %v1005, %v1008
      %v1010 = vrot.slane %v1009, 4
      %v1012 = vshll.u32 %v778, 16
      %v1014 = vrot.slane %v1012, 5
      %v1015 = vsel %vm809, %v1010, %v1014
      %v1016 = vshrl.u32 %v778, 16
      %v1018 = vrot.slane %v1016, 4
      %v1019 = vor.u32 %v1018, %v1014
      %v1020 = vrot.slane %v1019, 4
      %v1022 = vshll.u32 %v779, 16
      %v1024 = vrot.slane %v1022, 5
      %v1025 = vsel %vm809, %v1020, %v1024
      %v1027 = vshrl.u32 %v780, 16
      %v1029 = vrot.slane %v1027, 4
      %v1030 = vshll.u32 %v780, 16
      %v1032 = vrot.slane %v1030, 5
      %v1033 = vor.u32 %v1029, %v1032
      %v1034 = vrot.slane %v1033, 4
      %v1036 = vshll.u32 %v781, 16
      %v1038 = vrot.slane %v1036, 5
      %v1039 = vsel %vm809, %v1034, %v1038
      %v1040 = vshrl.u32 %v781, 16
      %v1042 = vrot.slane %v1040, 4
      %v1043 = vor.u32 %v1042, %v1038
      %v1044 = vrot.slane %v1043, 4
      %v1046 = vshll.u32 %v782, 16
      %v1048 = vrot.slane %v1046, 5
      %v1049 = vsel %vm809, %v1044, %v1048
      %v1051 = vshrl.u32 %v783, 16
      %v1053 = vrot.slane %v1051, 4
      %v1054 = vshll.u32 %v783, 16
      %v1056 = vrot.slane %v1054, 5
      %v1057 = vor.u32 %v1053, %v1056
      %v1058 = vrot.slane %v1057, 4
      %v1060 = vshll.u32 %v784, 16
      %v1062 = vrot.slane %v1060, 5
      %v1063 = vsel %vm809, %v1058, %v1062
      %v1064 = vshrl.u32 %v784, 16
      %v1066 = vrot.slane %v1064, 4
      %v1067 = vor.u32 %v1066, %v1062
      %v1068 = vrot.slane %v1067, 4
      %v1070 = vshll.u32 %v785, 16
      %v1072 = vrot.slane %v1070, 5
      %v1073 = vsel %vm809, %v1068, %v1072
      %v1075 = vshrl.u32 %v786, 16
      %v1077 = vrot.slane %v1075, 4
      %v1078 = vshll.u32 %v786, 16
      %v1080 = vrot.slane %v1078, 5
      %v1081 = vor.u32 %v1077, %v1080
      %v1082 = vrot.slane %v1081, 4
      %v1084 = vshll.u32 %v787, 16
      %v1086 = vrot.slane %v1084, 5
      %v1087 = vsel %vm809, %v1082, %v1086
      %v1088 = vshrl.u32 %v787, 16
      %v1090 = vrot.slane %v1088, 4
      %v1091 = vor.u32 %v1090, %v1086
      %v1092 = vrot.slane %v1091, 4
      %v1094 = vshll.u32 %v788, 16
      %v1096 = vrot.slane %v1094, 5
      %v1097 = vsel %vm809, %v1092, %v1096
      %v1099 = vshrl.u32 %v789, 16
      %v1101 = vrot.slane %v1099, 4
      %v1102 = vshll.u32 %v789, 16
      %v1104 = vrot.slane %v1102, 5
      %v1105 = vor.u32 %v1101, %v1104
      %v1106 = vrot.slane %v1105, 4
      %v1108 = vshll.u32 %v790, 16
      %v1110 = vrot.slane %v1108, 5
      %v1111 = vsel %vm809, %v1106, %v1110
      %v1112 = vshrl.u32 %v790, 16
      %v1114 = vrot.slane %v1112, 4
      %v1115 = vor.u32 %v1114, %v1110
      %v1116 = vrot.slane %v1115, 4
      %v1118 = vshll.u32 %v791, 16
      %v1120 = vrot.slane %v1118, 5
      %v1121 = vsel %vm809, %v1116, %v1120
      %v1123 = vshrl.u32 %v792, 16
      %v1125 = vrot.slane %v1123, 4
      %v1126 = vshll.u32 %v792, 16
      %v1128 = vrot.slane %v1126, 5
      %v1129 = vor.u32 %v1125, %v1128
      %v1130 = vrot.slane %v1129, 4
      %v1132 = vshll.u32 %v793, 16
      %v1134 = vrot.slane %v1132, 5
      %v1135 = vsel %vm809, %v1130, %v1134
      %v1136 = vshrl.u32 %v793, 16
      %v1138 = vrot.slane %v1136, 4
      %v1139 = vor.u32 %v1138, %v1134
      %v1140 = vrot.slane %v1139, 4
      %v1142 = vshll.u32 %v794, 16
      %v1144 = vrot.slane %v1142, 5
      %v1145 = vsel %vm809, %v1140, %v1144
      %v1147 = vshrl.u32 %v795, 16
      %v1149 = vrot.slane %v1147, 4
      %v1150 = vshll.u32 %v795, 16
      %v1152 = vrot.slane %v1150, 5
      %v1153 = vor.u32 %v1149, %v1152
      %v1154 = vrot.slane %v1153, 4
      %v1156 = vshll.u32 %v796, 16
      %v1158 = vrot.slane %v1156, 5
      %v1159 = vsel %vm809, %v1154, %v1158
      %v1160 = vshrl.u32 %v796, 16
      %v1162 = vrot.slane %v1160, 4
      %v1163 = vor.u32 %v1162, %v1158
      %v1164 = vrot.slane %v1163, 4
      %v1166 = vshll.u32 %v797, 16
      %v1168 = vrot.slane %v1166, 5
      %v1169 = vsel %vm809, %v1164, %v1168
      %v1171 = vshrl.u32 %v798, 16
      %v1173 = vrot.slane %v1171, 4
      %v1174 = vshll.u32 %v798, 16
      %v1176 = vrot.slane %v1174, 5
      %v1177 = vor.u32 %v1173, %v1176
      %v1178 = vrot.slane %v1177, 4
      %v1180 = vshll.u32 %v799, 16
      %v1182 = vrot.slane %v1180, 5
      %v1183 = vsel %vm809, %v1178, %v1182
      %v1184 = vshrl.u32 %v799, 16
      %v1186 = vrot.slane %v1184, 4
      %v1187 = vor.u32 %v1186, %v1182
      %v1188 = vrot.slane %v1187, 4
      %v1190 = vshll.u32 %v800, 16
      %v1192 = vrot.slane %v1190, 5
      %v1193 = vsel %vm809, %v1188, %v1192
      %vm1242 = vcmask 1042432
      %vm1243 = vcmask 1046532
      %vm1244 = vmor %vm1242, %vm1243
      %v1245 = vrot.slane %v753, 5
      %v1246 = vrot.slane %v1245, 4
      %v1247 = vrot.slane %v754, 5
      %v1248 = vsel %vm1244, %v1246, %v1247
      %v1249 = vrot.slane %v1247, 4
      %v1250 = vrot.slane %v755, 5
      %v1251 = vsel %vm1244, %v1249, %v1250
      %v1252 = vrot.slane %v756, 5
      %v1253 = vrot.slane %v1252, 4
      %v1254 = vrot.slane %v757, 5
      %v1255 = vsel %vm1244, %v1253, %v1254
      %v1256 = vrot.slane %v1254, 4
      %v1257 = vrot.slane %v758, 5
      %v1258 = vsel %vm1244, %v1256, %v1257
      %v1259 = vrot.slane %v759, 5
      %v1260 = vrot.slane %v1259, 4
      %v1261 = vrot.slane %v760, 5
      %v1262 = vsel %vm1244, %v1260, %v1261
      %v1263 = vrot.slane %v1261, 4
      %v1264 = vrot.slane %v761, 5
      %v1265 = vsel %vm1244, %v1263, %v1264
      %v1266 = vrot.slane %v762, 5
      %v1267 = vrot.slane %v1266, 4
      %v1268 = vrot.slane %v763, 5
      %v1269 = vsel %vm1244, %v1267, %v1268
      %v1270 = vrot.slane %v1268, 4
      %v1271 = vrot.slane %v764, 5
      %v1272 = vsel %vm1244, %v1270, %v1271
      %v1273 = vrot.slane %v765, 5
      %v1274 = vrot.slane %v1273, 4
      %v1275 = vrot.slane %v766, 5
      %v1276 = vsel %vm1244, %v1274, %v1275
      %v1277 = vrot.slane %v1275, 4
      %v1278 = vrot.slane %v767, 5
      %v1279 = vsel %vm1244, %v1277, %v1278
      %v1280 = vrot.slane %v768, 5
      %v1281 = vrot.slane %v1280, 4
      %v1282 = vrot.slane %v769, 5
      %v1283 = vsel %vm1244, %v1281, %v1282
      %v1284 = vrot.slane %v1282, 4
      %v1285 = vrot.slane %v770, 5
      %v1286 = vsel %vm1244, %v1284, %v1285
      %v1287 = vrot.slane %v771, 5
      %v1288 = vrot.slane %v1287, 4
      %v1289 = vrot.slane %v772, 5
      %v1290 = vsel %vm1244, %v1288, %v1289
      %v1291 = vrot.slane %v1289, 4
      %v1292 = vrot.slane %v773, 5
      %v1293 = vsel %vm1244, %v1291, %v1292
      %v1294 = vrot.slane %v774, 5
      %v1295 = vrot.slane %v1294, 4
      %v1296 = vrot.slane %v775, 5
      %v1297 = vsel %vm1244, %v1295, %v1296
      %v1298 = vrot.slane %v1296, 4
      %v1299 = vrot.slane %v776, 5
      %v1300 = vsel %vm1244, %v1298, %v1299
      %v1301 = vrot.slane %v777, 5
      %v1302 = vrot.slane %v1301, 4
      %v1303 = vrot.slane %v778, 5
      %v1304 = vsel %vm1244, %v1302, %v1303
      %v1305 = vrot.slane %v1303, 4
      %v1306 = vrot.slane %v779, 5
      %v1307 = vsel %vm1244, %v1305, %v1306
      %v1308 = vrot.slane %v780, 5
      %v1309 = vrot.slane %v1308, 4
      %v1310 = vrot.slane %v781, 5
      %v1311 = vsel %vm1244, %v1309, %v1310
      %v1312 = vrot.slane %v1310, 4
      %v1313 = vrot.slane %v782, 5
      %v1314 = vsel %vm1244, %v1312, %v1313
      %v1315 = vrot.slane %v783, 5
      %v1316 = vrot.slane %v1315, 4
      %v1317 = vrot.slane %v784, 5
      %v1318 = vsel %vm1244, %v1316, %v1317
      %v1319 = vrot.slane %v1317, 4
      %v1320 = vrot.slane %v785, 5
      %v1321 = vsel %vm1244, %v1319, %v1320
      %v1322 = vrot.slane %v786, 5
      %v1323 = vrot.slane %v1322, 4
      %v1324 = vrot.slane %v787, 5
      %v1325 = vsel %vm1244, %v1323, %v1324
      %v1326 = vrot.slane %v1324, 4
      %v1327 = vrot.slane %v788, 5
      %v1328 = vsel %vm1244, %v1326, %v1327
      %v1329 = vrot.slane %v789, 5
      %v1330 = vrot.slane %v1329, 4
      %v1331 = vrot.slane %v790, 5
      %v1332 = vsel %vm1244, %v1330, %v1331
      %v1333 = vrot.slane %v1331, 4
      %v1334 = vrot.slane %v791, 5
      %v1335 = vsel %vm1244, %v1333, %v1334
      %v1336 = vrot.slane %v792, 5
      %v1337 = vrot.slane %v1336, 4
      %v1338 = vrot.slane %v793, 5
      %v1339 = vsel %vm1244, %v1337, %v1338
      %v1340 = vrot.slane %v1338, 4
      %v1341 = vrot.slane %v794, 5
      %v1342 = vsel %vm1244, %v1340, %v1341
      %v1343 = vrot.slane %v795, 5
      %v1344 = vrot.slane %v1343, 4
      %v1345 = vrot.slane %v796, 5
      %v1346 = vsel %vm1244, %v1344, %v1345
      %v1347 = vrot.slane %v1345, 4
      %v1348 = vrot.slane %v797, 5
      %v1349 = vsel %vm1244, %v1347, %v1348
      %v1350 = vrot.slane %v798, 5
      %v1351 = vrot.slane %v1350, 4
      %v1352 = vrot.slane %v799, 5
      %v1353 = vsel %vm1244, %v1351, %v1352
      %v1354 = vrot.slane %v1352, 4
      %v1355 = vrot.slane %v800, 5
      %v1356 = vsel %vm1244, %v1354, %v1355
      %v1358 = vshrl.u32 %v801, 16
      %v1360 = vrot.slane %v1358, 4
      %v1361 = vshll.u32 %v801, 16
      %v1363 = vrot.slane %v1361, 5
      %v1364 = vor.u32 %v1360, %v1363
      %v1365 = vrot.slane %v1364, 4
      %v1367 = vshll.u32 %v802, 16
      %v1369 = vrot.slane %v1367, 5
      %v1370 = vsel %vm809, %v1365, %v1369
      %v1371 = vshrl.u32 %v802, 16
      %v1373 = vrot.slane %v1371, 4
      %v1374 = vor.u32 %v1373, %v1369
      %v1375 = vrot.slane %v1374, 4
      %v1377 = vshll.u32 %v803, 16
      %v1379 = vrot.slane %v1377, 5
      %v1380 = vsel %vm809, %v1375, %v1379
      %v1384 = vrot.slane %v801, 5
      %v1385 = vrot.slane %v1384, 4
      %v1386 = vrot.slane %v802, 5
      %v1387 = vsel %vm1244, %v1385, %v1386
      %v1388 = vrot.slane %v1386, 4
      %v1389 = vrot.slane %v803, 5
      %v1390 = vsel %vm1244, %v1388, %v1389
      %v1392 = vshrl.u32 %v804, 16
      %v1394 = vrot.slane %v1392, 4
      %v1395 = vshll.u32 %v804, 16
      %v1397 = vrot.slane %v1395, 5
      %v1398 = vor.u32 %v1394, %v1397
      %v1399 = vrot.slane %v1398, 4
      %v1401 = vshll.u32 %v805, 16
      %v1403 = vrot.slane %v1401, 5
      %v1404 = vsel %vm809, %v1399, %v1403
      %v1405 = vshrl.u32 %v805, 16
      %v1407 = vrot.slane %v1405, 4
      %v1408 = vor.u32 %v1407, %v1403
      %v1409 = vrot.slane %v1408, 4
      %v1411 = vshll.u32 %v806, 16
      %v1413 = vrot.slane %v1411, 5
      %v1414 = vsel %vm809, %v1409, %v1413
      %v1418 = vrot.slane %v804, 5
      %v1419 = vrot.slane %v1418, 4
      %v1420 = vrot.slane %v805, 5
      %v1421 = vsel %vm1244, %v1419, %v1420
      %v1422 = vrot.slane %v1420, 4
      %v1423 = vrot.slane %v806, 5
      %v1424 = vsel %vm1244, %v1422, %v1423
      %v1425 = vunpack.c.l.b16 %v753
      %v1426 = vunpack.c.l.b16 %v754
      %v1427 = vunpack.c.l.b16 %v756
      %v1428 = vunpack.c.l.b16 %v757
      %v1429 = vunpack.c.l.b16 %v759
      %v1430 = vunpack.c.l.b16 %v760
      %v1431 = vunpack.c.l.b16 %v762
      %v1432 = vunpack.c.l.b16 %v763
      %v1433 = vunpack.c.l.b16 %v765
      %v1434 = vunpack.c.l.b16 %v766
      %v1435 = vunpack.c.l.b16 %v768
      %v1436 = vunpack.c.l.b16 %v769
      %v1437 = vunpack.c.l.b16 %v771
      %v1438 = vunpack.c.l.b16 %v772
      %v1439 = vunpack.c.l.b16 %v774
      %v1440 = vunpack.c.l.b16 %v775
      %v1441 = vunpack.c.l.b16 %v777
      %v1442 = vunpack.c.l.b16 %v778
      %v1443 = vunpack.c.l.b16 %v780
      %v1444 = vunpack.c.l.b16 %v781
      %v1445 = vunpack.c.l.b16 %v783
      %v1446 = vunpack.c.l.b16 %v784
      %v1447 = vunpack.c.l.b16 %v786
      %v1448 = vunpack.c.l.b16 %v787
      %v1449 = vunpack.c.l.b16 %v789
      %v1450 = vunpack.c.l.b16 %v790
      %v1451 = vunpack.c.l.b16 %v792
      %v1452 = vunpack.c.l.b16 %v793
      %v1453 = vunpack.c.l.b16 %v795
      %v1454 = vunpack.c.l.b16 %v796
      %v1455 = vunpack.c.l.b16 %v798
      %v1456 = vunpack.c.l.b16 %v799
      %v1457 = vpack.c.b16 %v1426, %v1425
      %v1458 = vpack.c.b16 %v1428, %v1427
      %v1459 = vpack.c.b16 %v1430, %v1429
      %v1460 = vpack.c.b16 %v1432, %v1431
      %v1461 = vpack.c.b16 %v1434, %v1433
      %v1462 = vpack.c.b16 %v1436, %v1435
      %v1463 = vpack.c.b16 %v1438, %v1437
      %v1464 = vpack.c.b16 %v1440, %v1439
      %v1465 = vpack.c.b16 %v1442, %v1441
      %v1466 = vpack.c.b16 %v1444, %v1443
      %v1467 = vpack.c.b16 %v1446, %v1445
      %v1468 = vpack.c.b16 %v1448, %v1447
      %v1469 = vpack.c.b16 %v1450, %v1449
      %v1470 = vpack.c.b16 %v1452, %v1451
      %v1471 = vpack.c.b16 %v1454, %v1453
      %v1472 = vpack.c.b16 %v1456, %v1455
      %v1489 = vunpack.c.l.b16 %v823
      %v1490 = vunpack.c.l.b16 %v833
      %v1491 = vunpack.c.l.b16 %v847
      %v1492 = vunpack.c.l.b16 %v857
      %v1493 = vunpack.c.l.b16 %v871
      %v1494 = vunpack.c.l.b16 %v881
      %v1495 = vunpack.c.l.b16 %v895
      %v1496 = vunpack.c.l.b16 %v905
      %v1497 = vunpack.c.l.b16 %v919
      %v1498 = vunpack.c.l.b16 %v929
      %v1499 = vunpack.c.l.b16 %v943
      %v1500 = vunpack.c.l.b16 %v953
      %v1501 = vunpack.c.l.b16 %v967
      %v1502 = vunpack.c.l.b16 %v977
      %v1503 = vunpack.c.l.b16 %v991
      %v1504 = vunpack.c.l.b16 %v1001
      %v1505 = vunpack.c.l.b16 %v1015
      %v1506 = vunpack.c.l.b16 %v1025
      %v1507 = vunpack.c.l.b16 %v1039
      %v1508 = vunpack.c.l.b16 %v1049
      %v1509 = vunpack.c.l.b16 %v1063
      %v1510 = vunpack.c.l.b16 %v1073
      %v1511 = vunpack.c.l.b16 %v1087
      %v1512 = vunpack.c.l.b16 %v1097
      %v1513 = vunpack.c.l.b16 %v1111
      %v1514 = vunpack.c.l.b16 %v1121
      %v1515 = vunpack.c.l.b16 %v1135
      %v1516 = vunpack.c.l.b16 %v1145
      %v1517 = vunpack.c.l.b16 %v1159
      %v1518 = vunpack.c.l.b16 %v1169
      %v1519 = vunpack.c.l.b16 %v1183
      %v1520 = vunpack.c.l.b16 %v1193
      %v1521 = vpack.c.b16 %v1490, %v1489
      %v1522 = vpack.c.b16 %v1492, %v1491
      %v1523 = vpack.c.b16 %v1494, %v1493
      %v1524 = vpack.c.b16 %v1496, %v1495
      %v1525 = vpack.c.b16 %v1498, %v1497
      %v1526 = vpack.c.b16 %v1500, %v1499
      %v1527 = vpack.c.b16 %v1502, %v1501
      %v1528 = vpack.c.b16 %v1504, %v1503
      %v1529 = vpack.c.b16 %v1506, %v1505
      %v1530 = vpack.c.b16 %v1508, %v1507
      %v1531 = vpack.c.b16 %v1510, %v1509
      %v1532 = vpack.c.b16 %v1512, %v1511
      %v1533 = vpack.c.b16 %v1514, %v1513
      %v1534 = vpack.c.b16 %v1516, %v1515
      %v1535 = vpack.c.b16 %v1518, %v1517
      %v1536 = vpack.c.b16 %v1520, %v1519
      %v1553 = vunpack.c.l.b16 %v1248
      %v1554 = vunpack.c.l.b16 %v1251
      %v1555 = vunpack.c.l.b16 %v1255
      %v1556 = vunpack.c.l.b16 %v1258
      %v1557 = vunpack.c.l.b16 %v1262
      %v1558 = vunpack.c.l.b16 %v1265
      %v1559 = vunpack.c.l.b16 %v1269
      %v1560 = vunpack.c.l.b16 %v1272
      %v1561 = vunpack.c.l.b16 %v1276
      %v1562 = vunpack.c.l.b16 %v1279
      %v1563 = vunpack.c.l.b16 %v1283
      %v1564 = vunpack.c.l.b16 %v1286
      %v1565 = vunpack.c.l.b16 %v1290
      %v1566 = vunpack.c.l.b16 %v1293
      %v1567 = vunpack.c.l.b16 %v1297
      %v1568 = vunpack.c.l.b16 %v1300
      %v1569 = vunpack.c.l.b16 %v1304
      %v1570 = vunpack.c.l.b16 %v1307
      %v1571 = vunpack.c.l.b16 %v1311
      %v1572 = vunpack.c.l.b16 %v1314
      %v1573 = vunpack.c.l.b16 %v1318
      %v1574 = vunpack.c.l.b16 %v1321
      %v1575 = vunpack.c.l.b16 %v1325
      %v1576 = vunpack.c.l.b16 %v1328
      %v1577 = vunpack.c.l.b16 %v1332
      %v1578 = vunpack.c.l.b16 %v1335
      %v1579 = vunpack.c.l.b16 %v1339
      %v1580 = vunpack.c.l.b16 %v1342
      %v1581 = vunpack.c.l.b16 %v1346
      %v1582 = vunpack.c.l.b16 %v1349
      %v1583 = vunpack.c.l.b16 %v1353
      %v1584 = vunpack.c.l.b16 %v1356
      %v1585 = vpack.c.b16 %v1554, %v1553
      %v1586 = vpack.c.b16 %v1556, %v1555
      %v1587 = vpack.c.b16 %v1558, %v1557
      %v1588 = vpack.c.b16 %v1560, %v1559
      %v1589 = vpack.c.b16 %v1562, %v1561
      %v1590 = vpack.c.b16 %v1564, %v1563
      %v1591 = vpack.c.b16 %v1566, %v1565
      %v1592 = vpack.c.b16 %v1568, %v1567
      %v1593 = vpack.c.b16 %v1570, %v1569
      %v1594 = vpack.c.b16 %v1572, %v1571
      %v1595 = vpack.c.b16 %v1574, %v1573
      %v1596 = vpack.c.b16 %v1576, %v1575
      %v1597 = vpack.c.b16 %v1578, %v1577
      %v1598 = vpack.c.b16 %v1580, %v1579
      %v1599 = vpack.c.b16 %v1582, %v1581
      %v1600 = vpack.c.b16 %v1584, %v1583
      %v1617 = vunpack.c.l.b16 %v801
      %v1618 = vunpack.c.l.b16 %v802
      %v1619 = vpack.c.b16 %v1618, %v1617
      %v1621 = vunpack.c.l.b16 %v1370
      %v1622 = vunpack.c.l.b16 %v1380
      %v1623 = vpack.c.b16 %v1622, %v1621
      %v1625 = vunpack.c.l.b16 %v1387
      %v1626 = vunpack.c.l.b16 %v1390
      %v1627 = vpack.c.b16 %v1626, %v1625
      %v1629 = vunpack.c.l.b16 %v804
      %v1630 = vunpack.c.l.b16 %v805
      %v1631 = vpack.c.b16 %v1630, %v1629
      %v1633 = vunpack.c.l.b16 %v1404
      %v1634 = vunpack.c.l.b16 %v1414
      %v1635 = vpack.c.b16 %v1634, %v1633
      %v1637 = vunpack.c.l.b16 %v1421
      %v1638 = vunpack.c.l.b16 %v1424
      %v1639 = vpack.c.b16 %v1638, %v1637
      %v1641 = vld [vmem:[%s1] sm:$0xf]
      %v1642 = vld [vmem:[%s1 + $0x4] sm:$0xf]
      %v1643 = vld [vmem:[%s1 + $0x8] sm:$0xf]
      %v1644 = vld [vmem:[%s1 + $0xc] sm:$0xf]
      %v1645 = vld [vmem:[%s1 + $0x10] sm:$0xf]
      %v1646 = vld [vmem:[%s1 + $0x14] sm:$0xf]
      %v1647 = vld [vmem:[%s1 + $0x18] sm:$0xf]
      %v1648 = vld [vmem:[%s1 + $0x1c] sm:$0xf]
      %v1649 = vld [vmem:[%s1 + $0x20] sm:$0xf]
      %v1650 = vld [vmem:[%s1 + $0x24] sm:$0xf]
      %v1651 = vld [vmem:[%s1 + $0x28] sm:$0xf]
      %v1652 = vld [vmem:[%s1 + $0x2c] sm:$0xf]
      %v1653 = vld [vmem:[%s1 + $0x30] sm:$0xf]
      %v1654 = vld [vmem:[%s1 + $0x34] sm:$0xf]
      %v1655 = vld [vmem:[%s1 + $0x38] sm:$0xf]
      %v1656 = vld [vmem:[%s1 + $0x3c] sm:$0xf]
      %v1657 = vld [vmem:[%s1 + $0x40] sm:$0xf]
      %v1658 = vld [vmem:[%s1 + $0x44] sm:$0xf]
      %v1659 = vld [vmem:[%s1 + $0x48] sm:$0xf]
      %v1660 = vld [vmem:[%s1 + $0x4c] sm:$0xf]
      %v1661 = vld [vmem:[%s1 + $0x50] sm:$0xf]
      %v1662 = vld [vmem:[%s1 + $0x54] sm:$0xf]
      %v1663 = vld [vmem:[%s1 + $0x58] sm:$0xf]
      %v1664 = vld [vmem:[%s1 + $0x5c] sm:$0xf]
      %v1665 = vld [vmem:[%s1 + $0x60] sm:$0xf]
      %v1666 = vld [vmem:[%s1 + $0x64] sm:$0xf]
      %v1667 = vld [vmem:[%s1 + $0x68] sm:$0xf]
      %v1668 = vld [vmem:[%s1 + $0x6c] sm:$0xf]
      %v1669 = vld [vmem:[%s1 + $0x70] sm:$0xf]
      %v1670 = vld [vmem:[%s1 + $0x74] sm:$0xf]
      %v1671 = vld [vmem:[%s1 + $0x78] sm:$0xf]
      %v1672 = vld [vmem:[%s1 + $0x7c] sm:$0xf]
      %v1673 = vld [vmem:[%s1 + $0x80] sm:$0xf]
      %v1674 = vld [vmem:[%s1 + $0x84] sm:$0xf]
      %v1675 = vld [vmem:[%s1 + $0x88] sm:$0xf]
      %v1676 = vld [vmem:[%s1 + $0x8c] sm:$0xf]
      %v1677 = vld [vmem:[%s1 + $0x90] sm:$0xf]
      %v1678 = vld [vmem:[%s1 + $0x94] sm:$0xf]
      %v1679 = vld [vmem:[%s1 + $0x98] sm:$0xf]
      %v1680 = vld [vmem:[%s1 + $0x9c] sm:$0xf]
      %v1681 = vld [vmem:[%s1 + $0xa0] sm:$0xf]
      %v1682 = vld [vmem:[%s1 + $0xa4] sm:$0xf]
      %v1683 = vld [vmem:[%s1 + $0xa8] sm:$0xf]
      %v1684 = vld [vmem:[%s1 + $0xac] sm:$0xf]
      %v1685 = vld [vmem:[%s1 + $0xb0] sm:$0xf]
      %v1686 = vld [vmem:[%s1 + $0xb4] sm:$0xf]
      %v1687 = vld [vmem:[%s1 + $0xb8] sm:$0xf]
      %v1688 = vld [vmem:[%s1 + $0xbc] sm:$0xf]
      %v1689 = vld [vmem:[%s1 + $0xc0] sm:$0xf]
      %v1690 = vld [vmem:[%s1 + $0xc4] sm:$0xf]
      %v1691 = vld [vmem:[%s1 + $0xc8] sm:$0xf]
      %v1692 = vld [vmem:[%s1 + $0xcc] sm:$0xf]
      %v1693 = vld [vmem:[%s1 + $0xd0] sm:$0xf]
      %v1694 = vld [vmem:[%s1 + $0xd4] sm:$0xf]
      %v1695 = vld [vmem:[%s1 + $0xd8] sm:$0xf]
      %v1696 = vld [vmem:[%s1 + $0xdc] sm:$0xf]
      %v1697 = vld [vmem:[%s1 + $0xe0] sm:$0xf]
      %v1698 = vld [vmem:[%s1 + $0xe4] sm:$0xf]
      %v1699 = vld [vmem:[%s1 + $0xe8] sm:$0xf]
      %v1700 = vld [vmem:[%s1 + $0xec] sm:$0xf]
      %v1701 = vld [vmem:[%s1 + $0xf0] sm:$0xf]
      %v1702 = vld [vmem:[%s1 + $0xf4] sm:$0xf]
      %v1703 = vld [vmem:[%s1 + $0xf8] sm:$0xf]
      %v1704 = vld [vmem:[%s1 + $0xfc] sm:$0xf]
      %v1705 = vld [vmem:[%s1 + $0x100] sm:$0xf]
      %v1706 = vld [vmem:[%s1 + $0x104] sm:$0xf]
      %v1707 = vld [vmem:[%s1 + $0x108] sm:$0xf]
      %v1708 = vld [vmem:[%s1 + $0x10c] sm:$0xf]
      %v1709 = vld [vmem:[%s1 + $0x110] sm:$0xf]
      %v1710 = vld [vmem:[%s1 + $0x114] sm:$0xf]
      %v1711 = vld [vmem:[%s1 + $0x118] sm:$0xf]
      %v1712 = vld [vmem:[%s1 + $0x11c] sm:$0xf]
      %v1713 = vld [vmem:[%s1 + $0x120] sm:$0xf]
      %v1714 = vld [vmem:[%s1 + $0x124] sm:$0xf]
      %v1715 = vld [vmem:[%s1 + $0x128] sm:$0xf]
      %v1716 = vld [vmem:[%s1 + $0x12c] sm:$0xf]
      %v1717 = vld [vmem:[%s1 + $0x130] sm:$0xf]
      %v1718 = vld [vmem:[%s1 + $0x134] sm:$0xf]
      %v1719 = vld [vmem:[%s1 + $0x138] sm:$0xf]
      %v1720 = vld [vmem:[%s1 + $0x13c] sm:$0xf]
      %v1721 = vld [vmem:[%s1 + $0x140] sm:$0xf]
      %v1722 = vld [vmem:[%s1 + $0x144] sm:$0xf]
      %v1723 = vld [vmem:[%s1 + $0x148] sm:$0xf]
      %v1724 = vld [vmem:[%s1 + $0x14c] sm:$0xf]
      %v1725 = vld [vmem:[%s1 + $0x150] sm:$0xf]
      %v1726 = vld [vmem:[%s1 + $0x154] sm:$0xf]
      %v1727 = vld [vmem:[%s1 + $0x158] sm:$0xf]
      %v1728 = vld [vmem:[%s1 + $0x15c] sm:$0xf]
      %v1729 = vld [vmem:[%s1 + $0x160] sm:$0xf]
      %v1730 = vld [vmem:[%s1 + $0x164] sm:$0xf]
      %v1731 = vld [vmem:[%s1 + $0x168] sm:$0xf]
      %v1732 = vld [vmem:[%s1 + $0x16c] sm:$0xf]
      %v1733 = vld [vmem:[%s1 + $0x170] sm:$0xf]
      %v1734 = vld [vmem:[%s1 + $0x174] sm:$0xf]
      %v1735 = vld [vmem:[%s1 + $0x178] sm:$0xf]
      %v1736 = vld [vmem:[%s1 + $0x17c] sm:$0xf]
      %v1737 = vld [vmem:[%s1 + $0x180] sm:$0xf]
      %v1738 = vld [vmem:[%s1 + $0x184] sm:$0xf]
      %v1739 = vld [vmem:[%s1 + $0x188] sm:$0xf]
      %v1740 = vld [vmem:[%s1 + $0x18c] sm:$0xf]
      %v1741 = vld [vmem:[%s1 + $0x190] sm:$0xf]
      %v1742 = vld [vmem:[%s1 + $0x194] sm:$0xf]
      %v1743 = vld [vmem:[%s1 + $0x198] sm:$0xf]
      %v1744 = vld [vmem:[%s1 + $0x19c] sm:$0xf]
      %v1745 = vld [vmem:[%s1 + $0x1a0] sm:$0xf]
      %v1746 = vld [vmem:[%s1 + $0x1a4] sm:$0xf]
      %v1747 = vld [vmem:[%s1 + $0x1a8] sm:$0xf]
      %v1748 = vld [vmem:[%s1 + $0x1ac] sm:$0xf]
      %v1749 = vld [vmem:[%s1 + $0x1b0] sm:$0xf]
      %v1750 = vld [vmem:[%s1 + $0x1b4] sm:$0xf]
      %v1751 = vld [vmem:[%s1 + $0x1b8] sm:$0xf]
      %v1752 = vld [vmem:[%s1 + $0x1bc] sm:$0xf]
      %v1753 = vld [vmem:[%s1 + $0x1c0] sm:$0xf]
      %v1754 = vld [vmem:[%s1 + $0x1c4] sm:$0xf]
      %v1755 = vld [vmem:[%s1 + $0x1c8] sm:$0xf]
      %v1756 = vld [vmem:[%s1 + $0x1cc] sm:$0xf]
      %v1757 = vld [vmem:[%s1 + $0x1d0] sm:$0xf]
      %v1758 = vld [vmem:[%s1 + $0x1d4] sm:$0xf]
      %v1759 = vld [vmem:[%s1 + $0x1d8] sm:$0xf]
      %v1760 = vld [vmem:[%s1 + $0x1dc] sm:$0xf]
      %v1761 = vld [vmem:[%s1 + $0x1e0] sm:$0xf]
      %v1762 = vld [vmem:[%s1 + $0x1e4] sm:$0xf]
      %v1763 = vld [vmem:[%s1 + $0x1e8] sm:$0xf]
      %v1764 = vld [vmem:[%s1 + $0x1ec] sm:$0xf]
      %v1765 = vld [vmem:[%s1 + $0x1f0] sm:$0xf]
      %v1766 = vld [vmem:[%s1 + $0x1f4] sm:$0xf]
      %v1767 = vld [vmem:[%s1 + $0x1f8] sm:$0xf]
      %v1768 = vld [vmem:[%s1 + $0x1fc] sm:$0xf]
      %v1769 = vld [vmem:[%s1 + $0x200] sm:$0xf]
      %v1770 = vld [vmem:[%s1 + $0x204] sm:$0xf]
      %v1771 = vld [vmem:[%s1 + $0x208] sm:$0xf]
      %v1772 = vld [vmem:[%s1 + $0x20c] sm:$0xf]
      %v1773 = vld [vmem:[%s1 + $0x210] sm:$0xf]
      %v1774 = vld [vmem:[%s1 + $0x214] sm:$0xf]
      %v1775 = vld [vmem:[%s1 + $0x218] sm:$0xf]
      %v1776 = vld [vmem:[%s1 + $0x21c] sm:$0xf]
      %v1777 = vld [vmem:[%s1 + $0x220] sm:$0xf]
      %v1778 = vld [vmem:[%s1 + $0x224] sm:$0xf]
      %v1779 = vld [vmem:[%s1 + $0x228] sm:$0xf]
      %v1780 = vld [vmem:[%s1 + $0x22c] sm:$0xf]
      %v1781 = vld [vmem:[%s1 + $0x230] sm:$0xf]
      %v1782 = vld [vmem:[%s1 + $0x234] sm:$0xf]
      %v1783 = vld [vmem:[%s1 + $0x238] sm:$0xf]
      %v1784 = vld [vmem:[%s1 + $0x23c] sm:$0xf]
      %v1785 = vld [vmem:[%s2] sm:$0x1]
      %v1787 = vlaneseq
      %v1788 = vshrl.u32 %v1787, 7
      %v1789 = vsub.s32 0, %v1788
      %v1790 = vrot.slane %v1785, %v1789
      %v1936 = vunpack.c.l.b16 %v1641
      %v1937 = vunpack.c.l.b16 %v1642
      %v1938 = vunpack.c.l.b16 %v1643
      %v1939 = vunpack.c.l.b16 %v1644
      %v1940 = vunpack.c.l.b16 %v1645
      %v1941 = vunpack.c.l.b16 %v1646
      %v1942 = vunpack.c.l.b16 %v1647
      %v1943 = vunpack.c.l.b16 %v1648
      %v1944 = vunpack.c.l.b16 %v1649
      %v1945 = vunpack.c.l.b16 %v1650
      %v1946 = vunpack.c.l.b16 %v1651
      %v1947 = vunpack.c.l.b16 %v1652
      %v1948 = vunpack.c.l.b16 %v1653
      %v1949 = vunpack.c.l.b16 %v1654
      %v1950 = vunpack.c.l.b16 %v1655
      %v1951 = vunpack.c.l.b16 %v1656
      %v1952 = vunpack.c.l.b16 %v1657
      %v1953 = vunpack.c.l.b16 %v1658
      %v1954 = vunpack.c.l.b16 %v1659
      %v1955 = vunpack.c.l.b16 %v1660
      %v1956 = vunpack.c.l.b16 %v1661
      %v1957 = vunpack.c.l.b16 %v1662
      %v1958 = vunpack.c.l.b16 %v1663
      %v1959 = vunpack.c.l.b16 %v1664
      %v1960 = vunpack.c.l.b16 %v1665
      %v1961 = vunpack.c.l.b16 %v1666
      %v1962 = vunpack.c.l.b16 %v1667
      %v1963 = vunpack.c.l.b16 %v1668
      %v1964 = vunpack.c.l.b16 %v1669
      %v1965 = vunpack.c.l.b16 %v1670
      %v1966 = vunpack.c.l.b16 %v1671
      %v1967 = vunpack.c.l.b16 %v1672
      %v1968 = vunpack.c.l.b16 %v1673
      %v1969 = vunpack.c.l.b16 %v1674
      %v1970 = vunpack.c.l.b16 %v1675
      %v1971 = vunpack.c.l.b16 %v1676
      %v1972 = vunpack.c.l.b16 %v1677
      %v1973 = vunpack.c.l.b16 %v1678
      %v1974 = vunpack.c.l.b16 %v1679
      %v1975 = vunpack.c.l.b16 %v1680
      %v1976 = vunpack.c.l.b16 %v1681
      %v1977 = vunpack.c.l.b16 %v1682
      %v1978 = vunpack.c.l.b16 %v1683
      %v1979 = vunpack.c.l.b16 %v1684
      %v1980 = vunpack.c.l.b16 %v1685
      %v1981 = vunpack.c.l.b16 %v1686
      %v1982 = vunpack.c.l.b16 %v1687
      %v1983 = vunpack.c.l.b16 %v1688
      %v1984 = vunpack.c.l.b16 %v1689
      %v1985 = vunpack.c.l.b16 %v1690
      %v1986 = vunpack.c.l.b16 %v1691
      %v1987 = vunpack.c.l.b16 %v1692
      %v1988 = vunpack.c.l.b16 %v1693
      %v1989 = vunpack.c.l.b16 %v1694
      %v1990 = vunpack.c.l.b16 %v1695
      %v1991 = vunpack.c.l.b16 %v1696
      %v1992 = vunpack.c.l.b16 %v1697
      %v1993 = vunpack.c.l.b16 %v1698
      %v1994 = vunpack.c.l.b16 %v1699
      %v1995 = vunpack.c.l.b16 %v1700
      %v1996 = vunpack.c.l.b16 %v1701
      %v1997 = vunpack.c.l.b16 %v1702
      %v1998 = vunpack.c.l.b16 %v1703
      %v1999 = vunpack.c.l.b16 %v1704
      %v2000 = vunpack.c.l.b16 %v1705
      %v2001 = vunpack.c.l.b16 %v1706
      %v2002 = vunpack.c.l.b16 %v1707
      %v2003 = vunpack.c.l.b16 %v1708
      %v2004 = vunpack.c.l.b16 %v1709
      %v2005 = vunpack.c.l.b16 %v1710
      %v2006 = vunpack.c.l.b16 %v1711
      %v2007 = vunpack.c.l.b16 %v1712
      %v2008 = vunpack.c.l.b16 %v1713
      %v2009 = vunpack.c.l.b16 %v1714
      %v2010 = vunpack.c.l.b16 %v1715
      %v2011 = vunpack.c.l.b16 %v1716
      %v2012 = vunpack.c.l.b16 %v1717
      %v2013 = vunpack.c.l.b16 %v1718
      %v2014 = vunpack.c.l.b16 %v1719
      %v2015 = vunpack.c.l.b16 %v1720
      %v2016 = vunpack.c.l.b16 %v1721
      %v2017 = vunpack.c.l.b16 %v1722
      %v2018 = vunpack.c.l.b16 %v1723
      %v2019 = vunpack.c.l.b16 %v1724
      %v2020 = vunpack.c.l.b16 %v1725
      %v2021 = vunpack.c.l.b16 %v1726
      %v2022 = vunpack.c.l.b16 %v1727
      %v2023 = vunpack.c.l.b16 %v1728
      %v2024 = vunpack.c.l.b16 %v1729
      %v2025 = vunpack.c.l.b16 %v1730
      %v2026 = vunpack.c.l.b16 %v1731
      %v2027 = vunpack.c.l.b16 %v1732
      %v2028 = vunpack.c.l.b16 %v1733
      %v2029 = vunpack.c.l.b16 %v1734
      %v2030 = vunpack.c.l.b16 %v1735
      %v2031 = vunpack.c.l.b16 %v1736
      %v2032 = vunpack.c.l.b16 %v1737
      %v2033 = vunpack.c.l.b16 %v1738
      %v2034 = vunpack.c.l.b16 %v1739
      %v2035 = vunpack.c.l.b16 %v1740
      %v2036 = vunpack.c.l.b16 %v1741
      %v2037 = vunpack.c.l.b16 %v1742
      %v2038 = vunpack.c.l.b16 %v1743
      %v2039 = vunpack.c.l.b16 %v1744
      %v2040 = vunpack.c.l.b16 %v1745
      %v2041 = vunpack.c.l.b16 %v1746
      %v2042 = vunpack.c.l.b16 %v1747
      %v2043 = vunpack.c.l.b16 %v1748
      %v2044 = vunpack.c.l.b16 %v1749
      %v2045 = vunpack.c.l.b16 %v1750
      %v2046 = vunpack.c.l.b16 %v1751
      %v2047 = vunpack.c.l.b16 %v1752
      %v2048 = vunpack.c.l.b16 %v1753
      %v2049 = vunpack.c.l.b16 %v1754
      %v2050 = vunpack.c.l.b16 %v1755
      %v2051 = vunpack.c.l.b16 %v1756
      %v2052 = vunpack.c.l.b16 %v1757
      %v2053 = vunpack.c.l.b16 %v1758
      %v2054 = vunpack.c.l.b16 %v1759
      %v2055 = vunpack.c.l.b16 %v1760
      %v2056 = vunpack.c.l.b16 %v1761
      %v2057 = vunpack.c.l.b16 %v1762
      %v2058 = vunpack.c.l.b16 %v1763
      %v2059 = vunpack.c.l.b16 %v1764
      %v2060 = vunpack.c.l.b16 %v1765
      %v2061 = vunpack.c.l.b16 %v1766
      %v2062 = vunpack.c.l.b16 %v1767
      %v2063 = vunpack.c.l.b16 %v1768
      %v2064 = vunpack.c.l.b16 %v1769
      %v2065 = vunpack.c.l.b16 %v1770
      %v2066 = vunpack.c.l.b16 %v1771
      %v2067 = vunpack.c.l.b16 %v1772
      %v2068 = vunpack.c.l.b16 %v1773
      %v2069 = vunpack.c.l.b16 %v1774
      %v2070 = vunpack.c.l.b16 %v1775
      %v2071 = vunpack.c.l.b16 %v1776
      %v2072 = vunpack.c.l.b16 %v1777
      %v2073 = vunpack.c.l.b16 %v1778
      %v2074 = vunpack.c.l.b16 %v1779
      %v2075 = vunpack.c.l.b16 %v1780
      %v2076 = vunpack.c.l.b16 %v1781
      %v2077 = vunpack.c.l.b16 %v1782
      %v2078 = vunpack.c.l.b16 %v1783
      %v2079 = vunpack.c.l.b16 %v1784
      %v2080 = vpack.c.b16 %v1937, %v1936
      %v2081 = vpack.c.b16 %v1939, %v1938
      %v2082 = vpack.c.b16 %v1941, %v1940
      %v2083 = vpack.c.b16 %v1943, %v1942
      %v2084 = vpack.c.b16 %v1945, %v1944
      %v2085 = vpack.c.b16 %v1947, %v1946
      %v2086 = vpack.c.b16 %v1949, %v1948
      %v2087 = vpack.c.b16 %v1951, %v1950
      %v2088 = vpack.c.b16 %v1953, %v1952
      %v2089 = vpack.c.b16 %v1955, %v1954
      %v2090 = vpack.c.b16 %v1957, %v1956
      %v2091 = vpack.c.b16 %v1959, %v1958
      %v2092 = vpack.c.b16 %v1961, %v1960
      %v2093 = vpack.c.b16 %v1963, %v1962
      %v2094 = vpack.c.b16 %v1965, %v1964
      %v2095 = vpack.c.b16 %v1967, %v1966
      %v2096 = vpack.c.b16 %v1969, %v1968
      %v2097 = vpack.c.b16 %v1971, %v1970
      %v2098 = vpack.c.b16 %v1973, %v1972
      %v2099 = vpack.c.b16 %v1975, %v1974
      %v2100 = vpack.c.b16 %v1977, %v1976
      %v2101 = vpack.c.b16 %v1979, %v1978
      %v2102 = vpack.c.b16 %v1981, %v1980
      %v2103 = vpack.c.b16 %v1983, %v1982
      %v2104 = vpack.c.b16 %v1985, %v1984
      %v2105 = vpack.c.b16 %v1987, %v1986
      %v2106 = vpack.c.b16 %v1989, %v1988
      %v2107 = vpack.c.b16 %v1991, %v1990
      %v2108 = vpack.c.b16 %v1993, %v1992
      %v2109 = vpack.c.b16 %v1995, %v1994
      %v2110 = vpack.c.b16 %v1997, %v1996
      %v2111 = vpack.c.b16 %v1999, %v1998
      %v2112 = vpack.c.b16 %v2001, %v2000
      %v2113 = vpack.c.b16 %v2003, %v2002
      %v2114 = vpack.c.b16 %v2005, %v2004
      %v2115 = vpack.c.b16 %v2007, %v2006
      %v2116 = vpack.c.b16 %v2009, %v2008
      %v2117 = vpack.c.b16 %v2011, %v2010
      %v2118 = vpack.c.b16 %v2013, %v2012
      %v2119 = vpack.c.b16 %v2015, %v2014
      %v2120 = vpack.c.b16 %v2017, %v2016
      %v2121 = vpack.c.b16 %v2019, %v2018
      %v2122 = vpack.c.b16 %v2021, %v2020
      %v2123 = vpack.c.b16 %v2023, %v2022
      %v2124 = vpack.c.b16 %v2025, %v2024
      %v2125 = vpack.c.b16 %v2027, %v2026
      %v2126 = vpack.c.b16 %v2029, %v2028
      %v2127 = vpack.c.b16 %v2031, %v2030
      %v2128 = vpack.c.b16 %v2033, %v2032
      %v2129 = vpack.c.b16 %v2035, %v2034
      %v2130 = vpack.c.b16 %v2037, %v2036
      %v2131 = vpack.c.b16 %v2039, %v2038
      %v2132 = vpack.c.b16 %v2041, %v2040
      %v2133 = vpack.c.b16 %v2043, %v2042
      %v2134 = vpack.c.b16 %v2045, %v2044
      %v2135 = vpack.c.b16 %v2047, %v2046
      %v2136 = vpack.c.b16 %v2049, %v2048
      %v2137 = vpack.c.b16 %v2051, %v2050
      %v2138 = vpack.c.b16 %v2053, %v2052
      %v2139 = vpack.c.b16 %v2055, %v2054
      %v2140 = vpack.c.b16 %v2057, %v2056
      %v2141 = vpack.c.b16 %v2059, %v2058
      %v2142 = vpack.c.b16 %v2061, %v2060
      %v2143 = vpack.c.b16 %v2063, %v2062
      %v2144 = vpack.c.b16 %v2065, %v2064
      %v2145 = vpack.c.b16 %v2067, %v2066
      %v2146 = vpack.c.b16 %v2069, %v2068
      %v2147 = vpack.c.b16 %v2071, %v2070
      %v2148 = vpack.c.b16 %v2073, %v2072
      %v2149 = vpack.c.b16 %v2075, %v2074
      %v2150 = vpack.c.b16 %v2077, %v2076
      %v2151 = vpack.c.b16 %v2079, %v2078
      %2224 = vmatprep.subr.bf16.mxu0 0
      %2225 = vmatpush1.bf16.msra.mxu0 %v2087
      %2226 = vmatprep.subr.bf16.mxu0 0
      %2227 = vmatpush1.bf16.msra.mxu0 %v2086
      %2228 = vmatprep.subr.bf16.mxu0 0
      %2229 = vmatpush1.bf16.msra.mxu0 %v2085
      %2230 = vmatprep.subr.bf16.mxu0 0
      %2231 = vmatpush1.bf16.msra.mxu0 %v2084
      %2232 = vmatprep.subr.bf16.mxu0 0
      %2233 = vmatpush1.bf16.msra.mxu0 %v2083
      %2234 = vmatprep.subr.bf16.mxu0 0
      %2235 = vmatpush1.bf16.msra.mxu0 %v2082
      %2236 = vmatprep.subr.bf16.mxu0 0
      %2237 = vmatpush1.bf16.msra.mxu0 %v2081
      %2238 = vmatprep.subr.bf16.mxu0 0
      %2239 = vmatpush1.bf16.msra.mxu0 %v2080
      %2240 = vmatprep.subr.bf16.mxu0 0
      %2241 = vmatpush2.bf16.msra.mxu0 %v2095
      %2242 = vmatprep.subr.bf16.mxu0 0
      %2243 = vmatpush2.bf16.msra.mxu0 %v2094
      %2244 = vmatprep.subr.bf16.mxu0 0
      %2245 = vmatpush2.bf16.msra.mxu0 %v2093
      %2246 = vmatprep.subr.bf16.mxu0 0
      %2247 = vmatpush2.bf16.msra.mxu0 %v2092
      %2248 = vmatprep.subr.bf16.mxu0 0
      %2249 = vmatpush2.bf16.msra.mxu0 %v2091
      %2250 = vmatprep.subr.bf16.mxu0 0
      %2251 = vmatpush2.bf16.msra.mxu0 %v2090
      %2252 = vmatprep.subr.bf16.mxu0 0
      %2253 = vmatpush2.bf16.msra.mxu0 %v2089
      %2254 = vmatprep.subr.bf16.mxu0 0
      %2255 = vmatpush2.bf16.msra.mxu0 %v2088
      %2256 = vmatprep.mubr.bf16.mxu0 %v1521
      %2257 = vmatmul.mubr.bf16.gmra.mxu0 %v1457
      %v2258 = vpop.f32.mrf.mxu0
      %v2259 = vadd.f32 %v1790, %v2258
      %v2260 = vpop.f32.mrf.mxu0
      %v2261 = vpop.f32.mrf.mxu0
      %v2262 = vadd.f32 %v1790, %v2261
      %v2263 = vpop.f32.mrf.mxu0
      %2264 = vmatprep.mubr.bf16.mxu0 %v1522
      %2265 = vmatmul.mubr.bf16.gmra.mxu0 %v1458
      %v2266 = vpop.f32.mrf.mxu0
      %v2267 = vadd.f32 %v1790, %v2266
      %v2268 = vpop.f32.mrf.mxu0
      %v2269 = vpop.f32.mrf.mxu0
      %v2270 = vadd.f32 %v1790, %v2269
      %v2271 = vpop.f32.mrf.mxu0
      %2272 = vmatprep.mubr.bf16.mxu0 %v1523
      %2273 = vmatmul.mubr.bf16.gmra.mxu0 %v1459
      %v2274 = vpop.f32.mrf.mxu0
      %v2275 = vadd.f32 %v1790, %v2274
      %v2276 = vpop.f32.mrf.mxu0
      %v2277 = vpop.f32.mrf.mxu0
      %v2278 = vadd.f32 %v1790, %v2277
      %v2279 = vpop.f32.mrf.mxu0
      %2280 = vmatprep.mubr.bf16.mxu0 %v1524
      %2281 = vmatmul.mubr.bf16.gmra.mxu0 %v1460
      %v2282 = vpop.f32.mrf.mxu0
      %v2283 = vadd.f32 %v1790, %v2282
      %v2284 = vpop.f32.mrf.mxu0
      %v2285 = vpop.f32.mrf.mxu0
      %v2286 = vadd.f32 %v1790, %v2285
      %v2287 = vpop.f32.mrf.mxu0
      %2288 = vmatprep.mubr.bf16.mxu0 %v1525
      %2289 = vmatmul.mubr.bf16.gmra.mxu0 %v1461
      %v2290 = vpop.f32.mrf.mxu0
      %v2291 = vadd.f32 %v1790, %v2290
      %v2292 = vpop.f32.mrf.mxu0
      %v2293 = vpop.f32.mrf.mxu0
      %v2294 = vadd.f32 %v1790, %v2293
      %v2295 = vpop.f32.mrf.mxu0
      %2296 = vmatprep.mubr.bf16.mxu0 %v1526
      %2297 = vmatmul.mubr.bf16.gmra.mxu0 %v1462
      %v2298 = vpop.f32.mrf.mxu0
      %v2299 = vadd.f32 %v1790, %v2298
      %v2300 = vpop.f32.mrf.mxu0
      %v2301 = vpop.f32.mrf.mxu0
      %v2302 = vadd.f32 %v1790, %v2301
      %v2303 = vpop.f32.mrf.mxu0
      %2304 = vmatprep.mubr.bf16.mxu0 %v1527
      %2305 = vmatmul.mubr.bf16.gmra.mxu0 %v1463
      %v2306 = vpop.f32.mrf.mxu0
      %v2307 = vadd.f32 %v1790, %v2306
      %v2308 = vpop.f32.mrf.mxu0
      %v2309 = vpop.f32.mrf.mxu0
      %v2310 = vadd.f32 %v1790, %v2309
      %v2311 = vpop.f32.mrf.mxu0
      %2312 = vmatprep.mubr.bf16.mxu0 %v1528
      %2313 = vmatmul.mubr.bf16.gmra.mxu0 %v1464
      %v2314 = vpop.f32.mrf.mxu0
      %v2315 = vadd.f32 %v1790, %v2314
      %v2316 = vpop.f32.mrf.mxu0
      %v2317 = vpop.f32.mrf.mxu0
      %v2318 = vadd.f32 %v1790, %v2317
      %v2319 = vpop.f32.mrf.mxu0
      %2320 = vmatprep.mubr.bf16.mxu0 %v1529
      %2321 = vmatmul.mubr.bf16.gmra.mxu0 %v1465
      %v2322 = vpop.f32.mrf.mxu0
      %v2323 = vadd.f32 %v1790, %v2322
      %v2324 = vpop.f32.mrf.mxu0
      %v2325 = vpop.f32.mrf.mxu0
      %v2326 = vadd.f32 %v1790, %v2325
      %v2327 = vpop.f32.mrf.mxu0
      %2328 = vmatprep.mubr.bf16.mxu0 %v1530
      %2329 = vmatmul.mubr.bf16.gmra.mxu0 %v1466
      %v2330 = vpop.f32.mrf.mxu0
      %v2331 = vadd.f32 %v1790, %v2330
      %v2332 = vpop.f32.mrf.mxu0
      %v2333 = vpop.f32.mrf.mxu0
      %v2334 = vadd.f32 %v1790, %v2333
      %v2335 = vpop.f32.mrf.mxu0
      %2336 = vmatprep.mubr.bf16.mxu0 %v1531
      %2337 = vmatmul.mubr.bf16.gmra.mxu0 %v1467
      %v2338 = vpop.f32.mrf.mxu0
      %v2339 = vadd.f32 %v1790, %v2338
      %v2340 = vpop.f32.mrf.mxu0
      %v2341 = vpop.f32.mrf.mxu0
      %v2342 = vadd.f32 %v1790, %v2341
      %v2343 = vpop.f32.mrf.mxu0
      %2344 = vmatprep.mubr.bf16.mxu0 %v1532
      %2345 = vmatmul.mubr.bf16.gmra.mxu0 %v1468
      %v2346 = vpop.f32.mrf.mxu0
      %v2347 = vadd.f32 %v1790, %v2346
      %v2348 = vpop.f32.mrf.mxu0
      %v2349 = vpop.f32.mrf.mxu0
      %v2350 = vadd.f32 %v1790, %v2349
      %v2351 = vpop.f32.mrf.mxu0
      %2352 = vmatprep.mubr.bf16.mxu0 %v1533
      %2353 = vmatmul.mubr.bf16.gmra.mxu0 %v1469
      %v2354 = vpop.f32.mrf.mxu0
      %v2355 = vadd.f32 %v1790, %v2354
      %v2356 = vpop.f32.mrf.mxu0
      %v2357 = vpop.f32.mrf.mxu0
      %v2358 = vadd.f32 %v1790, %v2357
      %v2359 = vpop.f32.mrf.mxu0
      %2360 = vmatprep.mubr.bf16.mxu0 %v1534
      %2361 = vmatmul.mubr.bf16.gmra.mxu0 %v1470
      %v2362 = vpop.f32.mrf.mxu0
      %v2363 = vadd.f32 %v1790, %v2362
      %v2364 = vpop.f32.mrf.mxu0
      %v2365 = vpop.f32.mrf.mxu0
      %v2366 = vadd.f32 %v1790, %v2365
      %v2367 = vpop.f32.mrf.mxu0
      %2368 = vmatprep.mubr.bf16.mxu0 %v1535
      %2369 = vmatmul.mubr.bf16.gmra.mxu0 %v1471
      %v2370 = vpop.f32.mrf.mxu0
      %v2371 = vadd.f32 %v1790, %v2370
      %v2372 = vpop.f32.mrf.mxu0
      %v2373 = vpop.f32.mrf.mxu0
      %v2374 = vadd.f32 %v1790, %v2373
      %v2375 = vpop.f32.mrf.mxu0
      %2376 = vmatprep.mubr.bf16.mxu0 %v1536
      %2377 = vmatmul.mubr.bf16.gmra.mxu0 %v1472
      %v2378 = vpop.f32.mrf.mxu0
      %v2379 = vadd.f32 %v1790, %v2378
      %v2380 = vpop.f32.mrf.mxu0
      %v2381 = vpop.f32.mrf.mxu0
      %v2382 = vadd.f32 %v1790, %v2381
      %v2383 = vpop.f32.mrf.mxu0
      %2384 = vdwg.mxu0
      %2385 = vmatprep.subr.bf16.mxu0 0
      %2386 = vmatpush1.bf16.msra.mxu0 %v2103
      %2387 = vmatprep.subr.bf16.mxu0 0
      %2388 = vmatpush1.bf16.msra.mxu0 %v2102
      %2389 = vmatprep.subr.bf16.mxu0 0
      %2390 = vmatpush1.bf16.msra.mxu0 %v2101
      %2391 = vmatprep.subr.bf16.mxu0 0
      %2392 = vmatpush1.bf16.msra.mxu0 %v2100
      %2393 = vmatprep.subr.bf16.mxu0 0
      %2394 = vmatpush1.bf16.msra.mxu0 %v2099
      %2395 = vmatprep.subr.bf16.mxu0 0
      %2396 = vmatpush1.bf16.msra.mxu0 %v2098
      %2397 = vmatprep.subr.bf16.mxu0 0
      %2398 = vmatpush1.bf16.msra.mxu0 %v2097
      %2399 = vmatprep.subr.bf16.mxu0 0
      %2400 = vmatpush1.bf16.msra.mxu0 %v2096
      %2401 = vmatprep.subr.bf16.mxu0 0
      %2402 = vmatpush2.bf16.msra.mxu0 %v2111
      %2403 = vmatprep.subr.bf16.mxu0 0
      %2404 = vmatpush2.bf16.msra.mxu0 %v2110
      %2405 = vmatprep.subr.bf16.mxu0 0
      %2406 = vmatpush2.bf16.msra.mxu0 %v2109
      %2407 = vmatprep.subr.bf16.mxu0 0
      %2408 = vmatpush2.bf16.msra.mxu0 %v2108
      %2409 = vmatprep.subr.bf16.mxu0 0
      %2410 = vmatpush2.bf16.msra.mxu0 %v2107
      %2411 = vmatprep.subr.bf16.mxu0 0
      %2412 = vmatpush2.bf16.msra.mxu0 %v2106
      %2413 = vmatprep.subr.bf16.mxu0 0
      %2414 = vmatpush2.bf16.msra.mxu0 %v2105
      %2415 = vmatprep.subr.bf16.mxu0 0
      %2416 = vmatpush2.bf16.msra.mxu0 %v2104
      %2417 = vmatprep.mubr.bf16.mxu0 %v1458
      %2418 = vmatmul.mubr.bf16.gmra.mxu0 %v1585
      %v2419 = vpop.f32.mrf.mxu0
      %v2420 = vadd.f32 %v2259, %v2419
      %v2421 = vpop.f32.mrf.mxu0
      %v2422 = vpop.f32.mrf.mxu0
      %v2423 = vadd.f32 %v2262, %v2422
      %v2424 = vpop.f32.mrf.mxu0
      %2425 = vmatprep.mubr.bf16.mxu0 %v1459
      %2426 = vmatmul.mubr.bf16.gmra.mxu0 %v1586
      %v2427 = vpop.f32.mrf.mxu0
      %v2428 = vadd.f32 %v2267, %v2427
      %v2429 = vpop.f32.mrf.mxu0
      %v2430 = vpop.f32.mrf.mxu0
      %v2431 = vadd.f32 %v2270, %v2430
      %v2432 = vpop.f32.mrf.mxu0
      %2433 = vmatprep.mubr.bf16.mxu0 %v1460
      %2434 = vmatmul.mubr.bf16.gmra.mxu0 %v1587
      %v2435 = vpop.f32.mrf.mxu0
      %v2436 = vadd.f32 %v2275, %v2435
      %v2437 = vpop.f32.mrf.mxu0
      %v2438 = vpop.f32.mrf.mxu0
      %v2439 = vadd.f32 %v2278, %v2438
      %v2440 = vpop.f32.mrf.mxu0
      %2441 = vmatprep.mubr.bf16.mxu0 %v1461
      %2442 = vmatmul.mubr.bf16.gmra.mxu0 %v1588
      %v2443 = vpop.f32.mrf.mxu0
      %v2444 = vadd.f32 %v2283, %v2443
      %v2445 = vpop.f32.mrf.mxu0
      %v2446 = vpop.f32.mrf.mxu0
      %v2447 = vadd.f32 %v2286, %v2446
      %v2448 = vpop.f32.mrf.mxu0
      %2449 = vmatprep.mubr.bf16.mxu0 %v1462
      %2450 = vmatmul.mubr.bf16.gmra.mxu0 %v1589
      %v2451 = vpop.f32.mrf.mxu0
      %v2452 = vadd.f32 %v2291, %v2451
      %v2453 = vpop.f32.mrf.mxu0
      %v2454 = vpop.f32.mrf.mxu0
      %v2455 = vadd.f32 %v2294, %v2454
      %v2456 = vpop.f32.mrf.mxu0
      %2457 = vmatprep.mubr.bf16.mxu0 %v1463
      %2458 = vmatmul.mubr.bf16.gmra.mxu0 %v1590
      %v2459 = vpop.f32.mrf.mxu0
      %v2460 = vadd.f32 %v2299, %v2459
      %v2461 = vpop.f32.mrf.mxu0
      %v2462 = vpop.f32.mrf.mxu0
      %v2463 = vadd.f32 %v2302, %v2462
      %v2464 = vpop.f32.mrf.mxu0
      %2465 = vmatprep.mubr.bf16.mxu0 %v1464
      %2466 = vmatmul.mubr.bf16.gmra.mxu0 %v1591
      %v2467 = vpop.f32.mrf.mxu0
      %v2468 = vadd.f32 %v2307, %v2467
      %v2469 = vpop.f32.mrf.mxu0
      %v2470 = vpop.f32.mrf.mxu0
      %v2471 = vadd.f32 %v2310, %v2470
      %v2472 = vpop.f32.mrf.mxu0
      %2473 = vmatprep.mubr.bf16.mxu0 %v1465
      %2474 = vmatmul.mubr.bf16.gmra.mxu0 %v1592
      %v2475 = vpop.f32.mrf.mxu0
      %v2476 = vadd.f32 %v2315, %v2475
      %v2477 = vpop.f32.mrf.mxu0
      %v2478 = vpop.f32.mrf.mxu0
      %v2479 = vadd.f32 %v2318, %v2478
      %v2480 = vpop.f32.mrf.mxu0
      %2481 = vmatprep.mubr.bf16.mxu0 %v1466
      %2482 = vmatmul.mubr.bf16.gmra.mxu0 %v1593
      %v2483 = vpop.f32.mrf.mxu0
      %v2484 = vadd.f32 %v2323, %v2483
      %v2485 = vpop.f32.mrf.mxu0
      %v2486 = vpop.f32.mrf.mxu0
      %v2487 = vadd.f32 %v2326, %v2486
      %v2488 = vpop.f32.mrf.mxu0
      %2489 = vmatprep.mubr.bf16.mxu0 %v1467
      %2490 = vmatmul.mubr.bf16.gmra.mxu0 %v1594
      %v2491 = vpop.f32.mrf.mxu0
      %v2492 = vadd.f32 %v2331, %v2491
      %v2493 = vpop.f32.mrf.mxu0
      %v2494 = vpop.f32.mrf.mxu0
      %v2495 = vadd.f32 %v2334, %v2494
      %v2496 = vpop.f32.mrf.mxu0
      %2497 = vmatprep.mubr.bf16.mxu0 %v1468
      %2498 = vmatmul.mubr.bf16.gmra.mxu0 %v1595
      %v2499 = vpop.f32.mrf.mxu0
      %v2500 = vadd.f32 %v2339, %v2499
      %v2501 = vpop.f32.mrf.mxu0
      %v2502 = vpop.f32.mrf.mxu0
      %v2503 = vadd.f32 %v2342, %v2502
      %v2504 = vpop.f32.mrf.mxu0
      %2505 = vmatprep.mubr.bf16.mxu0 %v1469
      %2506 = vmatmul.mubr.bf16.gmra.mxu0 %v1596
      %v2507 = vpop.f32.mrf.mxu0
      %v2508 = vadd.f32 %v2347, %v2507
      %v2509 = vpop.f32.mrf.mxu0
      %v2510 = vpop.f32.mrf.mxu0
      %v2511 = vadd.f32 %v2350, %v2510
      %v2512 = vpop.f32.mrf.mxu0
      %2513 = vmatprep.mubr.bf16.mxu0 %v1470
      %2514 = vmatmul.mubr.bf16.gmra.mxu0 %v1597
      %v2515 = vpop.f32.mrf.mxu0
      %v2516 = vadd.f32 %v2355, %v2515
      %v2517 = vpop.f32.mrf.mxu0
      %v2518 = vpop.f32.mrf.mxu0
      %v2519 = vadd.f32 %v2358, %v2518
      %v2520 = vpop.f32.mrf.mxu0
      %2521 = vmatprep.mubr.bf16.mxu0 %v1471
      %2522 = vmatmul.mubr.bf16.gmra.mxu0 %v1598
      %v2523 = vpop.f32.mrf.mxu0
      %v2524 = vadd.f32 %v2363, %v2523
      %v2525 = vpop.f32.mrf.mxu0
      %v2526 = vpop.f32.mrf.mxu0
      %v2527 = vadd.f32 %v2366, %v2526
      %v2528 = vpop.f32.mrf.mxu0
      %2529 = vmatprep.mubr.bf16.mxu0 %v1472
      %2530 = vmatmul.mubr.bf16.gmra.mxu0 %v1599
      %v2531 = vpop.f32.mrf.mxu0
      %v2532 = vadd.f32 %v2371, %v2531
      %v2533 = vpop.f32.mrf.mxu0
      %v2534 = vpop.f32.mrf.mxu0
      %v2535 = vadd.f32 %v2374, %v2534
      %v2536 = vpop.f32.mrf.mxu0
      %2537 = vmatprep.mubr.bf16.mxu0 %v1619
      %2538 = vmatmul.mubr.bf16.gmra.mxu0 %v1600
      %v2539 = vpop.f32.mrf.mxu0
      %v2540 = vadd.f32 %v2379, %v2539
      %v2541 = vpop.f32.mrf.mxu0
      %v2542 = vpop.f32.mrf.mxu0
      %v2543 = vadd.f32 %v2382, %v2542
      %v2544 = vpop.f32.mrf.mxu0
      %2545 = vdwg.mxu0
      %2546 = vmatprep.subr.bf16.mxu0 0
      %2547 = vmatpush1.bf16.msra.mxu0 %v2119
      %2548 = vmatprep.subr.bf16.mxu0 0
      %2549 = vmatpush1.bf16.msra.mxu0 %v2118
      %2550 = vmatprep.subr.bf16.mxu0 0
      %2551 = vmatpush1.bf16.msra.mxu0 %v2117
      %2552 = vmatprep.subr.bf16.mxu0 0
      %2553 = vmatpush1.bf16.msra.mxu0 %v2116
      %2554 = vmatprep.subr.bf16.mxu0 0
      %2555 = vmatpush1.bf16.msra.mxu0 %v2115
      %2556 = vmatprep.subr.bf16.mxu0 0
      %2557 = vmatpush1.bf16.msra.mxu0 %v2114
      %2558 = vmatprep.subr.bf16.mxu0 0
      %2559 = vmatpush1.bf16.msra.mxu0 %v2113
      %2560 = vmatprep.subr.bf16.mxu0 0
      %2561 = vmatpush1.bf16.msra.mxu0 %v2112
      %2562 = vmatprep.subr.bf16.mxu0 0
      %2563 = vmatpush2.bf16.msra.mxu0 %v2127
      %2564 = vmatprep.subr.bf16.mxu0 0
      %2565 = vmatpush2.bf16.msra.mxu0 %v2126
      %2566 = vmatprep.subr.bf16.mxu0 0
      %2567 = vmatpush2.bf16.msra.mxu0 %v2125
      %2568 = vmatprep.subr.bf16.mxu0 0
      %2569 = vmatpush2.bf16.msra.mxu0 %v2124
      %2570 = vmatprep.subr.bf16.mxu0 0
      %2571 = vmatpush2.bf16.msra.mxu0 %v2123
      %2572 = vmatprep.subr.bf16.mxu0 0
      %2573 = vmatpush2.bf16.msra.mxu0 %v2122
      %2574 = vmatprep.subr.bf16.mxu0 0
      %2575 = vmatpush2.bf16.msra.mxu0 %v2121
      %2576 = vmatprep.subr.bf16.mxu0 0
      %2577 = vmatpush2.bf16.msra.mxu0 %v2120
      %2578 = vmatprep.mubr.bf16.mxu0 %v1586
      %2579 = vmatmul.mubr.bf16.gmra.mxu0 %v1522
      %v2580 = vpop.f32.mrf.mxu0
      %v2581 = vadd.f32 %v2420, %v2580
      %v2582 = vpop.f32.mrf.mxu0
      %v2583 = vpop.f32.mrf.mxu0
      %v2584 = vadd.f32 %v2423, %v2583
      %v2585 = vpop.f32.mrf.mxu0
      %2586 = vmatprep.mubr.bf16.mxu0 %v1587
      %2587 = vmatmul.mubr.bf16.gmra.mxu0 %v1523
      %v2588 = vpop.f32.mrf.mxu0
      %v2589 = vadd.f32 %v2428, %v2588
      %v2590 = vpop.f32.mrf.mxu0
      %v2591 = vpop.f32.mrf.mxu0
      %v2592 = vadd.f32 %v2431, %v2591
      %v2593 = vpop.f32.mrf.mxu0
      %2594 = vmatprep.mubr.bf16.mxu0 %v1588
      %2595 = vmatmul.mubr.bf16.gmra.mxu0 %v1524
      %v2596 = vpop.f32.mrf.mxu0
      %v2597 = vadd.f32 %v2436, %v2596
      %v2598 = vpop.f32.mrf.mxu0
      %v2599 = vpop.f32.mrf.mxu0
      %v2600 = vadd.f32 %v2439, %v2599
      %v2601 = vpop.f32.mrf.mxu0
      %2602 = vmatprep.mubr.bf16.mxu0 %v1589
      %2603 = vmatmul.mubr.bf16.gmra.mxu0 %v1525
      %v2604 = vpop.f32.mrf.mxu0
      %v2605 = vadd.f32 %v2444, %v2604
      %v2606 = vpop.f32.mrf.mxu0
      %v2607 = vpop.f32.mrf.mxu0
      %v2608 = vadd.f32 %v2447, %v2607
      %v2609 = vpop.f32.mrf.mxu0
      %2610 = vmatprep.mubr.bf16.mxu0 %v1590
      %2611 = vmatmul.mubr.bf16.gmra.mxu0 %v1526
      %v2612 = vpop.f32.mrf.mxu0
      %v2613 = vadd.f32 %v2452, %v2612
      %v2614 = vpop.f32.mrf.mxu0
      %v2615 = vpop.f32.mrf.mxu0
      %v2616 = vadd.f32 %v2455, %v2615
      %v2617 = vpop.f32.mrf.mxu0
      %2618 = vmatprep.mubr.bf16.mxu0 %v1591
      %2619 = vmatmul.mubr.bf16.gmra.mxu0 %v1527
      %v2620 = vpop.f32.mrf.mxu0
      %v2621 = vadd.f32 %v2460, %v2620
      %v2622 = vpop.f32.mrf.mxu0
      %v2623 = vpop.f32.mrf.mxu0
      %v2624 = vadd.f32 %v2463, %v2623
      %v2625 = vpop.f32.mrf.mxu0
      %2626 = vmatprep.mubr.bf16.mxu0 %v1592
      %2627 = vmatmul.mubr.bf16.gmra.mxu0 %v1528
      %v2628 = vpop.f32.mrf.mxu0
      %v2629 = vadd.f32 %v2468, %v2628
      %v2630 = vpop.f32.mrf.mxu0
      %v2631 = vpop.f32.mrf.mxu0
      %v2632 = vadd.f32 %v2471, %v2631
      %v2633 = vpop.f32.mrf.mxu0
      %2634 = vmatprep.mubr.bf16.mxu0 %v1593
      %2635 = vmatmul.mubr.bf16.gmra.mxu0 %v1529
      %v2636 = vpop.f32.mrf.mxu0
      %v2637 = vadd.f32 %v2476, %v2636
      %v2638 = vpop.f32.mrf.mxu0
      %v2639 = vpop.f32.mrf.mxu0
      %v2640 = vadd.f32 %v2479, %v2639
      %v2641 = vpop.f32.mrf.mxu0
      %2642 = vmatprep.mubr.bf16.mxu0 %v1594
      %2643 = vmatmul.mubr.bf16.gmra.mxu0 %v1530
      %v2644 = vpop.f32.mrf.mxu0
      %v2645 = vadd.f32 %v2484, %v2644
      %v2646 = vpop.f32.mrf.mxu0
      %v2647 = vpop.f32.mrf.mxu0
      %v2648 = vadd.f32 %v2487, %v2647
      %v2649 = vpop.f32.mrf.mxu0
      %2650 = vmatprep.mubr.bf16.mxu0 %v1595
      %2651 = vmatmul.mubr.bf16.gmra.mxu0 %v1531
      %v2652 = vpop.f32.mrf.mxu0
      %v2653 = vadd.f32 %v2492, %v2652
      %v2654 = vpop.f32.mrf.mxu0
      %v2655 = vpop.f32.mrf.mxu0
      %v2656 = vadd.f32 %v2495, %v2655
      %v2657 = vpop.f32.mrf.mxu0
      %2658 = vmatprep.mubr.bf16.mxu0 %v1596
      %2659 = vmatmul.mubr.bf16.gmra.mxu0 %v1532
      %v2660 = vpop.f32.mrf.mxu0
      %v2661 = vadd.f32 %v2500, %v2660
      %v2662 = vpop.f32.mrf.mxu0
      %v2663 = vpop.f32.mrf.mxu0
      %v2664 = vadd.f32 %v2503, %v2663
      %v2665 = vpop.f32.mrf.mxu0
      %2666 = vmatprep.mubr.bf16.mxu0 %v1597
      %2667 = vmatmul.mubr.bf16.gmra.mxu0 %v1533
      %v2668 = vpop.f32.mrf.mxu0
      %v2669 = vadd.f32 %v2508, %v2668
      %v2670 = vpop.f32.mrf.mxu0
      %v2671 = vpop.f32.mrf.mxu0
      %v2672 = vadd.f32 %v2511, %v2671
      %v2673 = vpop.f32.mrf.mxu0
      %2674 = vmatprep.mubr.bf16.mxu0 %v1598
      %2675 = vmatmul.mubr.bf16.gmra.mxu0 %v1534
      %v2676 = vpop.f32.mrf.mxu0
      %v2677 = vadd.f32 %v2516, %v2676
      %v2678 = vpop.f32.mrf.mxu0
      %v2679 = vpop.f32.mrf.mxu0
      %v2680 = vadd.f32 %v2519, %v2679
      %v2681 = vpop.f32.mrf.mxu0
      %2682 = vmatprep.mubr.bf16.mxu0 %v1599
      %2683 = vmatmul.mubr.bf16.gmra.mxu0 %v1535
      %v2684 = vpop.f32.mrf.mxu0
      %v2685 = vadd.f32 %v2524, %v2684
      %v2686 = vpop.f32.mrf.mxu0
      %v2687 = vpop.f32.mrf.mxu0
      %v2688 = vadd.f32 %v2527, %v2687
      %v2689 = vpop.f32.mrf.mxu0
      %2690 = vmatprep.mubr.bf16.mxu0 %v1600
      %2691 = vmatmul.mubr.bf16.gmra.mxu0 %v1536
      %v2692 = vpop.f32.mrf.mxu0
      %v2693 = vadd.f32 %v2532, %v2692
      %v2694 = vpop.f32.mrf.mxu0
      %v2695 = vpop.f32.mrf.mxu0
      %v2696 = vadd.f32 %v2535, %v2695
      %v2697 = vpop.f32.mrf.mxu0
      %2698 = vmatprep.mubr.bf16.mxu0 %v1627
      %2699 = vmatmul.mubr.bf16.gmra.mxu0 %v1623
      %v2700 = vpop.f32.mrf.mxu0
      %v2701 = vadd.f32 %v2540, %v2700
      %v2702 = vpop.f32.mrf.mxu0
      %v2703 = vpop.f32.mrf.mxu0
      %v2704 = vadd.f32 %v2543, %v2703
      %v2705 = vpop.f32.mrf.mxu0
      %2706 = vdwg.mxu0
      %2707 = vmatprep.subr.bf16.mxu0 0
      %2708 = vmatpush1.bf16.msra.mxu0 %v2135
      %2709 = vmatprep.subr.bf16.mxu0 0
      %2710 = vmatpush1.bf16.msra.mxu0 %v2134
      %2711 = vmatprep.subr.bf16.mxu0 0
      %2712 = vmatpush1.bf16.msra.mxu0 %v2133
      %2713 = vmatprep.subr.bf16.mxu0 0
      %2714 = vmatpush1.bf16.msra.mxu0 %v2132
      %2715 = vmatprep.subr.bf16.mxu0 0
      %2716 = vmatpush1.bf16.msra.mxu0 %v2131
      %2717 = vmatprep.subr.bf16.mxu0 0
      %2718 = vmatpush1.bf16.msra.mxu0 %v2130
      %2719 = vmatprep.subr.bf16.mxu0 0
      %2720 = vmatpush1.bf16.msra.mxu0 %v2129
      %2721 = vmatprep.subr.bf16.mxu0 0
      %2722 = vmatpush1.bf16.msra.mxu0 %v2128
      %2723 = vmatprep.subr.bf16.mxu0 0
      %2724 = vmatpush2.bf16.msra.mxu0 %v2143
      %2725 = vmatprep.subr.bf16.mxu0 0
      %2726 = vmatpush2.bf16.msra.mxu0 %v2142
      %2727 = vmatprep.subr.bf16.mxu0 0
      %2728 = vmatpush2.bf16.msra.mxu0 %v2141
      %2729 = vmatprep.subr.bf16.mxu0 0
      %2730 = vmatpush2.bf16.msra.mxu0 %v2140
      %2731 = vmatprep.subr.bf16.mxu0 0
      %2732 = vmatpush2.bf16.msra.mxu0 %v2139
      %2733 = vmatprep.subr.bf16.mxu0 0
      %2734 = vmatpush2.bf16.msra.mxu0 %v2138
      %2735 = vmatprep.subr.bf16.mxu0 0
      %2736 = vmatpush2.bf16.msra.mxu0 %v2137
      %2737 = vmatprep.subr.bf16.mxu0 0
      %2738 = vmatpush2.bf16.msra.mxu0 %v2136
      %2739 = vmatprep.mubr.bf16.mxu0 %v1523
      %2740 = vmatmul.mubr.bf16.gmra.mxu0 %v1459
      %v2741 = vpop.f32.mrf.mxu0
      %v2742 = vadd.f32 %v2581, %v2741
      %v2743 = vpop.f32.mrf.mxu0
      %v2744 = vpop.f32.mrf.mxu0
      %v2745 = vadd.f32 %v2584, %v2744
      %v2746 = vpop.f32.mrf.mxu0
      %2747 = vmatprep.mubr.bf16.mxu0 %v1524
      %2748 = vmatmul.mubr.bf16.gmra.mxu0 %v1460
      %v2749 = vpop.f32.mrf.mxu0
      %v2750 = vadd.f32 %v2589, %v2749
      %v2751 = vpop.f32.mrf.mxu0
      %v2752 = vpop.f32.mrf.mxu0
      %v2753 = vadd.f32 %v2592, %v2752
      %v2754 = vpop.f32.mrf.mxu0
      %2755 = vmatprep.mubr.bf16.mxu0 %v1525
      %2756 = vmatmul.mubr.bf16.gmra.mxu0 %v1461
      %v2757 = vpop.f32.mrf.mxu0
      %v2758 = vadd.f32 %v2597, %v2757
      %v2759 = vpop.f32.mrf.mxu0
      %v2760 = vpop.f32.mrf.mxu0
      %v2761 = vadd.f32 %v2600, %v2760
      %v2762 = vpop.f32.mrf.mxu0
      %2763 = vmatprep.mubr.bf16.mxu0 %v1526
      %2764 = vmatmul.mubr.bf16.gmra.mxu0 %v1462
      %v2765 = vpop.f32.mrf.mxu0
      %v2766 = vadd.f32 %v2605, %v2765
      %v2767 = vpop.f32.mrf.mxu0
      %v2768 = vpop.f32.mrf.mxu0
      %v2769 = vadd.f32 %v2608, %v2768
      %v2770 = vpop.f32.mrf.mxu0
      %2771 = vmatprep.mubr.bf16.mxu0 %v1527
      %2772 = vmatmul.mubr.bf16.gmra.mxu0 %v1463
      %v2773 = vpop.f32.mrf.mxu0
      %v2774 = vadd.f32 %v2613, %v2773
      %v2775 = vpop.f32.mrf.mxu0
      %v2776 = vpop.f32.mrf.mxu0
      %v2777 = vadd.f32 %v2616, %v2776
      %v2778 = vpop.f32.mrf.mxu0
      %2779 = vmatprep.mubr.bf16.mxu0 %v1528
      %2780 = vmatmul.mubr.bf16.gmra.mxu0 %v1464
      %v2781 = vpop.f32.mrf.mxu0
      %v2782 = vadd.f32 %v2621, %v2781
      %v2783 = vpop.f32.mrf.mxu0
      %v2784 = vpop.f32.mrf.mxu0
      %v2785 = vadd.f32 %v2624, %v2784
      %v2786 = vpop.f32.mrf.mxu0
      %2787 = vmatprep.mubr.bf16.mxu0 %v1529
      %2788 = vmatmul.mubr.bf16.gmra.mxu0 %v1465
      %v2789 = vpop.f32.mrf.mxu0
      %v2790 = vadd.f32 %v2629, %v2789
      %v2791 = vpop.f32.mrf.mxu0
      %v2792 = vpop.f32.mrf.mxu0
      %v2793 = vadd.f32 %v2632, %v2792
      %v2794 = vpop.f32.mrf.mxu0
      %2795 = vmatprep.mubr.bf16.mxu0 %v1530
      %2796 = vmatmul.mubr.bf16.gmra.mxu0 %v1466
      %v2797 = vpop.f32.mrf.mxu0
      %v2798 = vadd.f32 %v2637, %v2797
      %v2799 = vpop.f32.mrf.mxu0
      %v2800 = vpop.f32.mrf.mxu0
      %v2801 = vadd.f32 %v2640, %v2800
      %v2802 = vpop.f32.mrf.mxu0
      %2803 = vmatprep.mubr.bf16.mxu0 %v1531
      %2804 = vmatmul.mubr.bf16.gmra.mxu0 %v1467
      %v2805 = vpop.f32.mrf.mxu0
      %v2806 = vadd.f32 %v2645, %v2805
      %v2807 = vpop.f32.mrf.mxu0
      %v2808 = vpop.f32.mrf.mxu0
      %v2809 = vadd.f32 %v2648, %v2808
      %v2810 = vpop.f32.mrf.mxu0
      %2811 = vmatprep.mubr.bf16.mxu0 %v1532
      %2812 = vmatmul.mubr.bf16.gmra.mxu0 %v1468
      %v2813 = vpop.f32.mrf.mxu0
      %v2814 = vadd.f32 %v2653, %v2813
      %v2815 = vpop.f32.mrf.mxu0
      %v2816 = vpop.f32.mrf.mxu0
      %v2817 = vadd.f32 %v2656, %v2816
      %v2818 = vpop.f32.mrf.mxu0
      %2819 = vmatprep.mubr.bf16.mxu0 %v1533
      %2820 = vmatmul.mubr.bf16.gmra.mxu0 %v1469
      %v2821 = vpop.f32.mrf.mxu0
      %v2822 = vadd.f32 %v2661, %v2821
      %v2823 = vpop.f32.mrf.mxu0
      %v2824 = vpop.f32.mrf.mxu0
      %v2825 = vadd.f32 %v2664, %v2824
      %v2826 = vpop.f32.mrf.mxu0
      %2827 = vmatprep.mubr.bf16.mxu0 %v1534
      %2828 = vmatmul.mubr.bf16.gmra.mxu0 %v1470
      %v2829 = vpop.f32.mrf.mxu0
      %v2830 = vadd.f32 %v2669, %v2829
      %v2831 = vpop.f32.mrf.mxu0
      %v2832 = vpop.f32.mrf.mxu0
      %v2833 = vadd.f32 %v2672, %v2832
      %v2834 = vpop.f32.mrf.mxu0
      %2835 = vmatprep.mubr.bf16.mxu0 %v1535
      %2836 = vmatmul.mubr.bf16.gmra.mxu0 %v1471
      %v2837 = vpop.f32.mrf.mxu0
      %v2838 = vadd.f32 %v2677, %v2837
      %v2839 = vpop.f32.mrf.mxu0
      %v2840 = vpop.f32.mrf.mxu0
      %v2841 = vadd.f32 %v2680, %v2840
      %v2842 = vpop.f32.mrf.mxu0
      %2843 = vmatprep.mubr.bf16.mxu0 %v1536
      %2844 = vmatmul.mubr.bf16.gmra.mxu0 %v1472
      %v2845 = vpop.f32.mrf.mxu0
      %v2846 = vadd.f32 %v2685, %v2845
      %v2847 = vpop.f32.mrf.mxu0
      %v2848 = vpop.f32.mrf.mxu0
      %v2849 = vadd.f32 %v2688, %v2848
      %v2850 = vpop.f32.mrf.mxu0
      %2851 = vmatprep.mubr.bf16.mxu0 %v1623
      %2852 = vmatmul.mubr.bf16.gmra.mxu0 %v1619
      %v2853 = vpop.f32.mrf.mxu0
      %v2854 = vadd.f32 %v2693, %v2853
      %v2855 = vpop.f32.mrf.mxu0
      %v2856 = vpop.f32.mrf.mxu0
      %v2857 = vadd.f32 %v2696, %v2856
      %v2858 = vpop.f32.mrf.mxu0
      %2859 = vmatprep.mubr.bf16.mxu0 %v1635
      %2860 = vmatmul.mubr.bf16.gmra.mxu0 %v1631
      %v2861 = vpop.f32.mrf.mxu0
      %v2862 = vadd.f32 %v2701, %v2861
      %v2863 = vpop.f32.mrf.mxu0
      %v2864 = vpop.f32.mrf.mxu0
      %v2865 = vadd.f32 %v2704, %v2864
      %v2866 = vpop.f32.mrf.mxu0
      %2867 = vdwg.mxu0
      %2868 = vmatprep.subr.bf16.mxu0 0
      %2869 = vmatpush1.bf16.msra.mxu0 %v2151
      %2870 = vmatprep.subr.bf16.mxu0 0
      %2871 = vmatpush1.bf16.msra.mxu0 %v2150
      %2872 = vmatprep.subr.bf16.mxu0 0
      %2873 = vmatpush1.bf16.msra.mxu0 %v2149
      %2874 = vmatprep.subr.bf16.mxu0 0
      %2875 = vmatpush1.bf16.msra.mxu0 %v2148
      %2876 = vmatprep.subr.bf16.mxu0 0
      %2877 = vmatpush1.bf16.msra.mxu0 %v2147
      %2878 = vmatprep.subr.bf16.mxu0 0
      %2879 = vmatpush1.bf16.msra.mxu0 %v2146
      %2880 = vmatprep.subr.bf16.mxu0 0
      %2881 = vmatpush1.bf16.msra.mxu0 %v2145
      %2882 = vmatprep.subr.bf16.mxu0 0
      %2883 = vmatpush1.bf16.msra.mxu0 %v2144
      %2884 = vmatprep.subr.bf16.mxu0 0
      %2885 = vmatpush2.bf16.msra.mxu0 0
      %2886 = vmatprep.subr.bf16.mxu0 0
      %2887 = vmatpush2.bf16.msra.mxu0 0
      %2888 = vmatprep.subr.bf16.mxu0 0
      %2889 = vmatpush2.bf16.msra.mxu0 0
      %2890 = vmatprep.subr.bf16.mxu0 0
      %2891 = vmatpush2.bf16.msra.mxu0 0
      %2892 = vmatprep.subr.bf16.mxu0 0
      %2893 = vmatpush2.bf16.msra.mxu0 0
      %2894 = vmatprep.subr.bf16.mxu0 0
      %2895 = vmatpush2.bf16.msra.mxu0 0
      %2896 = vmatprep.subr.bf16.mxu0 0
      %2897 = vmatpush2.bf16.msra.mxu0 0
      %2898 = vmatprep.subr.bf16.mxu0 0
      %2899 = vmatpush2.bf16.msra.mxu0 0
      %2900 = vmatprep.mubr.bf16.mxu0 0
      %2901 = vmatmul.mubr.bf16.gmra.mxu0 %v1587
      %v2902 = vpop.f32.mrf.mxu0
      %v2903 = vadd.f32 %v2742, %v2902
      %v2904 = vpop.f32.mrf.mxu0
      %v2905 = vpop.f32.mrf.mxu0
      %v2906 = vadd.f32 %v2745, %v2905
      %v2907 = vpop.f32.mrf.mxu0
      %2908 = vmatprep.mubr.bf16.mxu0 0
      %2909 = vmatmul.mubr.bf16.gmra.mxu0 %v1588
      %v2910 = vpop.f32.mrf.mxu0
      %v2911 = vadd.f32 %v2750, %v2910
      %v2912 = vpop.f32.mrf.mxu0
      %v2913 = vpop.f32.mrf.mxu0
      %v2914 = vadd.f32 %v2753, %v2913
      %v2915 = vpop.f32.mrf.mxu0
      %2916 = vmatprep.mubr.bf16.mxu0 0
      %2917 = vmatmul.mubr.bf16.gmra.mxu0 %v1589
      %v2918 = vpop.f32.mrf.mxu0
      %v2919 = vadd.f32 %v2758, %v2918
      %v2920 = vpop.f32.mrf.mxu0
      %v2921 = vpop.f32.mrf.mxu0
      %v2922 = vadd.f32 %v2761, %v2921
      %v2923 = vpop.f32.mrf.mxu0
      %2924 = vmatprep.mubr.bf16.mxu0 0
      %2925 = vmatmul.mubr.bf16.gmra.mxu0 %v1590
      %v2926 = vpop.f32.mrf.mxu0
      %v2927 = vadd.f32 %v2766, %v2926
      %v2928 = vpop.f32.mrf.mxu0
      %v2929 = vpop.f32.mrf.mxu0
      %v2930 = vadd.f32 %v2769, %v2929
      %v2931 = vpop.f32.mrf.mxu0
      %2932 = vmatprep.mubr.bf16.mxu0 0
      %2933 = vmatmul.mubr.bf16.gmra.mxu0 %v1591
      %v2934 = vpop.f32.mrf.mxu0
      %v2935 = vadd.f32 %v2774, %v2934
      %v2936 = vpop.f32.mrf.mxu0
      %v2937 = vpop.f32.mrf.mxu0
      %v2938 = vadd.f32 %v2777, %v2937
      %v2939 = vpop.f32.mrf.mxu0
      %2940 = vmatprep.mubr.bf16.mxu0 0
      %2941 = vmatmul.mubr.bf16.gmra.mxu0 %v1592
      %v2942 = vpop.f32.mrf.mxu0
      %v2943 = vadd.f32 %v2782, %v2942
      %v2944 = vpop.f32.mrf.mxu0
      %v2945 = vpop.f32.mrf.mxu0
      %v2946 = vadd.f32 %v2785, %v2945
      %v2947 = vpop.f32.mrf.mxu0
      %2948 = vmatprep.mubr.bf16.mxu0 0
      %2949 = vmatmul.mubr.bf16.gmra.mxu0 %v1593
      %v2950 = vpop.f32.mrf.mxu0
      %v2951 = vadd.f32 %v2790, %v2950
      %v2952 = vpop.f32.mrf.mxu0
      %v2953 = vpop.f32.mrf.mxu0
      %v2954 = vadd.f32 %v2793, %v2953
      %v2955 = vpop.f32.mrf.mxu0
      %2956 = vmatprep.mubr.bf16.mxu0 0
      %2957 = vmatmul.mubr.bf16.gmra.mxu0 %v1594
      %v2958 = vpop.f32.mrf.mxu0
      %v2959 = vadd.f32 %v2798, %v2958
      %v2960 = vpop.f32.mrf.mxu0
      %v2961 = vpop.f32.mrf.mxu0
      %v2962 = vadd.f32 %v2801, %v2961
      %v2963 = vpop.f32.mrf.mxu0
      %2964 = vmatprep.mubr.bf16.mxu0 0
      %2965 = vmatmul.mubr.bf16.gmra.mxu0 %v1595
      %v2966 = vpop.f32.mrf.mxu0
      %v2967 = vadd.f32 %v2806, %v2966
      %v2968 = vpop.f32.mrf.mxu0
      %v2969 = vpop.f32.mrf.mxu0
      %v2970 = vadd.f32 %v2809, %v2969
      %v2971 = vpop.f32.mrf.mxu0
      %2972 = vmatprep.mubr.bf16.mxu0 0
      %2973 = vmatmul.mubr.bf16.gmra.mxu0 %v1596
      %v2974 = vpop.f32.mrf.mxu0
      %v2975 = vadd.f32 %v2814, %v2974
      %v2976 = vpop.f32.mrf.mxu0
      %v2977 = vpop.f32.mrf.mxu0
      %v2978 = vadd.f32 %v2817, %v2977
      %v2979 = vpop.f32.mrf.mxu0
      %2980 = vmatprep.mubr.bf16.mxu0 0
      %2981 = vmatmul.mubr.bf16.gmra.mxu0 %v1597
      %v2982 = vpop.f32.mrf.mxu0
      %v2983 = vadd.f32 %v2822, %v2982
      %v2984 = vpop.f32.mrf.mxu0
      %v2985 = vpop.f32.mrf.mxu0
      %v2986 = vadd.f32 %v2825, %v2985
      %v2987 = vpop.f32.mrf.mxu0
      %2988 = vmatprep.mubr.bf16.mxu0 0
      %2989 = vmatmul.mubr.bf16.gmra.mxu0 %v1598
      %v2990 = vpop.f32.mrf.mxu0
      %v2991 = vadd.f32 %v2830, %v2990
      %v2992 = vpop.f32.mrf.mxu0
      %v2993 = vpop.f32.mrf.mxu0
      %v2994 = vadd.f32 %v2833, %v2993
      %v2995 = vpop.f32.mrf.mxu0
      %2996 = vmatprep.mubr.bf16.mxu0 0
      %2997 = vmatmul.mubr.bf16.gmra.mxu0 %v1599
      %v2998 = vpop.f32.mrf.mxu0
      %v2999 = vadd.f32 %v2838, %v2998
      %v3000 = vpop.f32.mrf.mxu0
      %v3001 = vpop.f32.mrf.mxu0
      %v3002 = vadd.f32 %v2841, %v3001
      %v3003 = vpop.f32.mrf.mxu0
      %3004 = vmatprep.mubr.bf16.mxu0 0
      %3005 = vmatmul.mubr.bf16.gmra.mxu0 %v1600
      %v3006 = vpop.f32.mrf.mxu0
      %v3007 = vadd.f32 %v2846, %v3006
      %v3008 = vpop.f32.mrf.mxu0
      %v3009 = vpop.f32.mrf.mxu0
      %v3010 = vadd.f32 %v2849, %v3009
      %v3011 = vpop.f32.mrf.mxu0
      %3012 = vmatprep.mubr.bf16.mxu0 0
      %3013 = vmatmul.mubr.bf16.gmra.mxu0 %v1627
      %v3014 = vpop.f32.mrf.mxu0
      %v3015 = vadd.f32 %v2854, %v3014
      %v3016 = vpop.f32.mrf.mxu0
      %v3017 = vpop.f32.mrf.mxu0
      %v3018 = vadd.f32 %v2857, %v3017
      %v3019 = vpop.f32.mrf.mxu0
      %3020 = vmatprep.mubr.bf16.mxu0 0
      %3021 = vmatmul.mubr.bf16.gmra.mxu0 %v1639
      %v3022 = vpop.f32.mrf.mxu0
      %v3023 = vadd.f32 %v2862, %v3022
      %v3024 = vpop.f32.mrf.mxu0
      %v3025 = vpop.f32.mrf.mxu0
      %v3026 = vadd.f32 %v2865, %v3025
      %v3027 = vpop.f32.mrf.mxu0
      %3028 = vdwg.mxu0
      %v3029 = vmax.f32 %v2903, 0.0
      %v3030 = vmax.f32 %v2906, 0.0
      %v3031 = vmax.f32 %v2911, 0.0
      %v3032 = vmax.f32 %v2914, 0.0
      %v3033 = vmax.f32 %v2919, 0.0
      %v3034 = vmax.f32 %v2922, 0.0
      %v3035 = vmax.f32 %v2927, 0.0
      %v3036 = vmax.f32 %v2930, 0.0
      %v3037 = vmax.f32 %v2935, 0.0
      %v3038 = vmax.f32 %v2938, 0.0
      %v3039 = vmax.f32 %v2943, 0.0
      %v3040 = vmax.f32 %v2946, 0.0
      %v3041 = vmax.f32 %v2951, 0.0
      %v3042 = vmax.f32 %v2954, 0.0
      %v3043 = vmax.f32 %v2959, 0.0
      %v3044 = vmax.f32 %v2962, 0.0
      %v3045 = vmax.f32 %v2967, 0.0
      %v3046 = vmax.f32 %v2970, 0.0
      %v3047 = vmax.f32 %v2975, 0.0
      %v3048 = vmax.f32 %v2978, 0.0
      %v3049 = vmax.f32 %v2983, 0.0
      %v3050 = vmax.f32 %v2986, 0.0
      %v3051 = vmax.f32 %v2991, 0.0
      %v3052 = vmax.f32 %v2994, 0.0
      %v3053 = vmax.f32 %v2999, 0.0
      %v3054 = vmax.f32 %v3002, 0.0
      %v3055 = vmax.f32 %v3007, 0.0
      %v3056 = vmax.f32 %v3010, 0.0
      %v3057 = vmax.f32 %v3015, 0.0
      %v3058 = vmax.f32 %v3018, 0.0
      %v3059 = vmax.f32 %v3023, 0.0
      %v3060 = vmax.f32 %v3026, 0.0
      %v3061 = vpack.c.bf16 %v3030, %v3029
      %v3062 = vpack.c.bf16 %v3032, %v3031
      %v3063 = vpack.c.bf16 %v3034, %v3033
      %v3064 = vpack.c.bf16 %v3036, %v3035
      %v3065 = vpack.c.bf16 %v3038, %v3037
      %v3066 = vpack.c.bf16 %v3040, %v3039
      %v3067 = vpack.c.bf16 %v3042, %v3041
      %v3068 = vpack.c.bf16 %v3044, %v3043
      %v3069 = vpack.c.bf16 %v3046, %v3045
      %v3070 = vpack.c.bf16 %v3048, %v3047
      %v3071 = vpack.c.bf16 %v3050, %v3049
      %v3072 = vpack.c.bf16 %v3052, %v3051
      %v3073 = vpack.c.bf16 %v3054, %v3053
      %v3074 = vpack.c.bf16 %v3056, %v3055
      %v3075 = vpack.c.bf16 %v3058, %v3057
      %v3076 = vpack.c.bf16 %v3060, %v3059
      %v3077 = vld [vmem:[%s3] sm:$0xf]
      %v3078 = vld [vmem:[%s3 + $0x4] sm:$0xf]
      %v3079 = vld [vmem:[%s3 + $0x8] sm:$0xf]
      %v3080 = vld [vmem:[%s3 + $0xc] sm:$0xf]
      %v3081 = vld [vmem:[%s3 + $0x10] sm:$0xf]
      %v3082 = vld [vmem:[%s3 + $0x14] sm:$0xf]
      %v3083 = vld [vmem:[%s3 + $0x18] sm:$0xf]
      %v3084 = vld [vmem:[%s3 + $0x1c] sm:$0xf]
      %v3085 = vld [vmem:[%s3 + $0x20] sm:$0xf]
      %v3086 = vld [vmem:[%s3 + $0x24] sm:$0xf]
      %v3087 = vld [vmem:[%s3 + $0x28] sm:$0xf]
      %v3088 = vld [vmem:[%s3 + $0x2c] sm:$0xf]
      %v3089 = vld [vmem:[%s3 + $0x30] sm:$0xf]
      %v3090 = vld [vmem:[%s3 + $0x34] sm:$0xf]
      %v3091 = vld [vmem:[%s3 + $0x38] sm:$0xf]
      %v3092 = vld [vmem:[%s3 + $0x3c] sm:$0xf]
      %v3093 = vld [vmem:[%s4] sm:$0x1]
      %v3095 = vlaneseq
      %v3096 = vshrl.u32 %v3095, 7
      %v3097 = vsub.s32 0, %v3096
      %v3098 = vrot.slane %v3093, %v3097
      %v3116 = vunpack.c.l.b16 %v3077
      %v3117 = vunpack.c.l.b16 %v3078
      %v3118 = vunpack.c.l.b16 %v3079
      %v3119 = vunpack.c.l.b16 %v3080
      %v3120 = vunpack.c.l.b16 %v3081
      %v3121 = vunpack.c.l.b16 %v3082
      %v3122 = vunpack.c.l.b16 %v3083
      %v3123 = vunpack.c.l.b16 %v3084
      %v3124 = vunpack.c.l.b16 %v3085
      %v3125 = vunpack.c.l.b16 %v3086
      %v3126 = vunpack.c.l.b16 %v3087
      %v3127 = vunpack.c.l.b16 %v3088
      %v3128 = vunpack.c.l.b16 %v3089
      %v3129 = vunpack.c.l.b16 %v3090
      %v3130 = vunpack.c.l.b16 %v3091
      %v3131 = vunpack.c.l.b16 %v3092
      %v3132 = vpack.c.b16 %v3117, %v3116
      %v3133 = vpack.c.b16 %v3119, %v3118
      %v3134 = vpack.c.b16 %v3121, %v3120
      %v3135 = vpack.c.b16 %v3123, %v3122
      %v3136 = vpack.c.b16 %v3125, %v3124
      %v3137 = vpack.c.b16 %v3127, %v3126
      %v3138 = vpack.c.b16 %v3129, %v3128
      %v3139 = vpack.c.b16 %v3131, %v3130
      %3148 = vmatprep.subr.bf16.mxu0 0
      %3149 = vmatpush1.bf16.msra.mxu0 %v3139
      %3150 = vmatprep.subr.bf16.mxu0 0
      %3151 = vmatpush1.bf16.msra.mxu0 %v3138
      %3152 = vmatprep.subr.bf16.mxu0 0
      %3153 = vmatpush1.bf16.msra.mxu0 %v3137
      %3154 = vmatprep.subr.bf16.mxu0 0
      %3155 = vmatpush1.bf16.msra.mxu0 %v3136
      %3156 = vmatprep.subr.bf16.mxu0 0
      %3157 = vmatpush1.bf16.msra.mxu0 %v3135
      %3158 = vmatprep.subr.bf16.mxu0 0
      %3159 = vmatpush1.bf16.msra.mxu0 %v3134
      %3160 = vmatprep.subr.bf16.mxu0 0
      %3161 = vmatpush1.bf16.msra.mxu0 %v3133
      %3162 = vmatprep.subr.bf16.mxu0 0
      %3163 = vmatpush1.bf16.msra.mxu0 %v3132
      %3164 = vmatprep.subr.bf16.mxu0 0
      %3165 = vmatpush2.bf16.msra.mxu0 0
      %3166 = vmatprep.subr.bf16.mxu0 0
      %3167 = vmatpush2.bf16.msra.mxu0 0
      %3168 = vmatprep.subr.bf16.mxu0 0
      %3169 = vmatpush2.bf16.msra.mxu0 0
      %3170 = vmatprep.subr.bf16.mxu0 0
      %3171 = vmatpush2.bf16.msra.mxu0 0
      %3172 = vmatprep.subr.bf16.mxu0 0
      %3173 = vmatpush2.bf16.msra.mxu0 0
      %3174 = vmatprep.subr.bf16.mxu0 0
      %3175 = vmatpush2.bf16.msra.mxu0 0
      %3176 = vmatprep.subr.bf16.mxu0 0
      %3177 = vmatpush2.bf16.msra.mxu0 0
      %3178 = vmatprep.subr.bf16.mxu0 0
      %3179 = vmatpush2.bf16.msra.mxu0 0
      %3180 = vmatprep.mubr.bf16.mxu0 0
      %3181 = vmatmul.mubr.bf16.gmra.mxu0 %v3061
      %v3182 = vpop.f32.mrf.mxu0
      %v3183 = vadd.f32 %v3098, %v3182
      %v3184 = vpop.f32.mrf.mxu0
      %v3185 = vpop.f32.mrf.mxu0
      %v3186 = vadd.f32 %v3098, %v3185
      %v3187 = vpop.f32.mrf.mxu0
      %3188 = vmatprep.mubr.bf16.mxu0 0
      %3189 = vmatmul.mubr.bf16.gmra.mxu0 %v3062
      %v3190 = vpop.f32.mrf.mxu0
      %v3191 = vadd.f32 %v3098, %v3190
      %v3192 = vpop.f32.mrf.mxu0
      %v3193 = vpop.f32.mrf.mxu0
      %v3194 = vadd.f32 %v3098, %v3193
      %v3195 = vpop.f32.mrf.mxu0
      %3196 = vmatprep.mubr.bf16.mxu0 0
      %3197 = vmatmul.mubr.bf16.gmra.mxu0 %v3063
      %v3198 = vpop.f32.mrf.mxu0
      %v3199 = vadd.f32 %v3098, %v3198
      %v3200 = vpop.f32.mrf.mxu0
      %v3201 = vpop.f32.mrf.mxu0
      %v3202 = vadd.f32 %v3098, %v3201
      %v3203 = vpop.f32.mrf.mxu0
      %3204 = vmatprep.mubr.bf16.mxu0 0
      %3205 = vmatmul.mubr.bf16.gmra.mxu0 %v3064
      %v3206 = vpop.f32.mrf.mxu0
      %v3207 = vadd.f32 %v3098, %v3206
      %v3208 = vpop.f32.mrf.mxu0
      %v3209 = vpop.f32.mrf.mxu0
      %v3210 = vadd.f32 %v3098, %v3209
      %v3211 = vpop.f32.mrf.mxu0
      %3212 = vmatprep.mubr.bf16.mxu0 0
      %3213 = vmatmul.mubr.bf16.gmra.mxu0 %v3065
      %v3214 = vpop.f32.mrf.mxu0
      %v3215 = vadd.f32 %v3098, %v3214
      %v3216 = vpop.f32.mrf.mxu0
      %v3217 = vpop.f32.mrf.mxu0
      %v3218 = vadd.f32 %v3098, %v3217
      %v3219 = vpop.f32.mrf.mxu0
      %3220 = vmatprep.mubr.bf16.mxu0 0
      %3221 = vmatmul.mubr.bf16.gmra.mxu0 %v3066
      %v3222 = vpop.f32.mrf.mxu0
      %v3223 = vadd.f32 %v3098, %v3222
      %v3224 = vpop.f32.mrf.mxu0
      %v3225 = vpop.f32.mrf.mxu0
      %v3226 = vadd.f32 %v3098, %v3225
      %v3227 = vpop.f32.mrf.mxu0
      %3228 = vmatprep.mubr.bf16.mxu0 0
      %3229 = vmatmul.mubr.bf16.gmra.mxu0 %v3067
      %v3230 = vpop.f32.mrf.mxu0
      %v3231 = vadd.f32 %v3098, %v3230
      %v3232 = vpop.f32.mrf.mxu0
      %v3233 = vpop.f32.mrf.mxu0
      %v3234 = vadd.f32 %v3098, %v3233
      %v3235 = vpop.f32.mrf.mxu0
      %3236 = vmatprep.mubr.bf16.mxu0 0
      %3237 = vmatmul.mubr.bf16.gmra.mxu0 %v3068
      %v3238 = vpop.f32.mrf.mxu0
      %v3239 = vadd.f32 %v3098, %v3238
      %v3240 = vpop.f32.mrf.mxu0
      %v3241 = vpop.f32.mrf.mxu0
      %v3242 = vadd.f32 %v3098, %v3241
      %v3243 = vpop.f32.mrf.mxu0
      %3244 = vmatprep.mubr.bf16.mxu0 0
      %3245 = vmatmul.mubr.bf16.gmra.mxu0 %v3069
      %v3246 = vpop.f32.mrf.mxu0
      %v3247 = vadd.f32 %v3098, %v3246
      %v3248 = vpop.f32.mrf.mxu0
      %v3249 = vpop.f32.mrf.mxu0
      %v3250 = vadd.f32 %v3098, %v3249
      %v3251 = vpop.f32.mrf.mxu0
      %3252 = vmatprep.mubr.bf16.mxu0 0
      %3253 = vmatmul.mubr.bf16.gmra.mxu0 %v3070
      %v3254 = vpop.f32.mrf.mxu0
      %v3255 = vadd.f32 %v3098, %v3254
      %v3256 = vpop.f32.mrf.mxu0
      %v3257 = vpop.f32.mrf.mxu0
      %v3258 = vadd.f32 %v3098, %v3257
      %v3259 = vpop.f32.mrf.mxu0
      %3260 = vmatprep.mubr.bf16.mxu0 0
      %3261 = vmatmul.mubr.bf16.gmra.mxu0 %v3071
      %v3262 = vpop.f32.mrf.mxu0
      %v3263 = vadd.f32 %v3098, %v3262
      %v3264 = vpop.f32.mrf.mxu0
      %v3265 = vpop.f32.mrf.mxu0
      %v3266 = vadd.f32 %v3098, %v3265
      %v3267 = vpop.f32.mrf.mxu0
      %3268 = vmatprep.mubr.bf16.mxu0 0
      %3269 = vmatmul.mubr.bf16.gmra.mxu0 %v3072
      %v3270 = vpop.f32.mrf.mxu0
      %v3271 = vadd.f32 %v3098, %v3270
      %v3272 = vpop.f32.mrf.mxu0
      %v3273 = vpop.f32.mrf.mxu0
      %v3274 = vadd.f32 %v3098, %v3273
      %v3275 = vpop.f32.mrf.mxu0
      %3276 = vmatprep.mubr.bf16.mxu0 0
      %3277 = vmatmul.mubr.bf16.gmra.mxu0 %v3073
      %v3278 = vpop.f32.mrf.mxu0
      %v3279 = vadd.f32 %v3098, %v3278
      %v3280 = vpop.f32.mrf.mxu0
      %v3281 = vpop.f32.mrf.mxu0
      %v3282 = vadd.f32 %v3098, %v3281
      %v3283 = vpop.f32.mrf.mxu0
      %3284 = vmatprep.mubr.bf16.mxu0 0
      %3285 = vmatmul.mubr.bf16.gmra.mxu0 %v3074
      %v3286 = vpop.f32.mrf.mxu0
      %v3287 = vadd.f32 %v3098, %v3286
      %v3288 = vpop.f32.mrf.mxu0
      %v3289 = vpop.f32.mrf.mxu0
      %v3290 = vadd.f32 %v3098, %v3289
      %v3291 = vpop.f32.mrf.mxu0
      %3292 = vmatprep.mubr.bf16.mxu0 0
      %3293 = vmatmul.mubr.bf16.gmra.mxu0 %v3075
      %v3294 = vpop.f32.mrf.mxu0
      %v3295 = vadd.f32 %v3098, %v3294
      %v3296 = vpop.f32.mrf.mxu0
      %v3297 = vpop.f32.mrf.mxu0
      %v3298 = vadd.f32 %v3098, %v3297
      %v3299 = vpop.f32.mrf.mxu0
      %3300 = vmatprep.mubr.bf16.mxu0 0
      %3301 = vmatmul.mubr.bf16.gmra.mxu0 %v3076
      %v3302 = vpop.f32.mrf.mxu0
      %v3303 = vadd.f32 %v3098, %v3302
      %v3304 = vpop.f32.mrf.mxu0
      %v3305 = vpop.f32.mrf.mxu0
      %v3306 = vadd.f32 %v3098, %v3305
      %v3307 = vpop.f32.mrf.mxu0
      %3308 = vdwg.mxu0
      %3309 = vst [vmem:[%s224] sm:$0xff] %v3183
      %3310 = vst [vmem:[%s224 + $0x8] sm:$0xff] %v3186
      %3311 = vst [vmem:[%s224 + $0x10] sm:$0xff] %v3191
      %3312 = vst [vmem:[%s224 + $0x18] sm:$0xff] %v3194
      %3313 = vst [vmem:[%s224 + $0x20] sm:$0xff] %v3199
      %3314 = vst [vmem:[%s224 + $0x28] sm:$0xff] %v3202
      %3315 = vst [vmem:[%s224 + $0x30] sm:$0xff] %v3207
      %3316 = vst [vmem:[%s224 + $0x38] sm:$0xff] %v3210
      %3317 = vst [vmem:[%s224 + $0x40] sm:$0xff] %v3215
      %3318 = vst [vmem:[%s224 + $0x48] sm:$0xff] %v3218
      %3319 = vst [vmem:[%s224 + $0x50] sm:$0xff] %v3223
      %3320 = vst [vmem:[%s224 + $0x58] sm:$0xff] %v3226
      %3321 = vst [vmem:[%s224 + $0x60] sm:$0xff] %v3231
      %3322 = vst [vmem:[%s224 + $0x68] sm:$0xff] %v3234
      %3323 = vst [vmem:[%s224 + $0x70] sm:$0xff] %v3239
      %3324 = vst [vmem:[%s224 + $0x78] sm:$0xff] %v3242
      %3325 = vst [vmem:[%s224 + $0x80] sm:$0xff] %v3247
      %3326 = vst [vmem:[%s224 + $0x88] sm:$0xff] %v3250
      %3327 = vst [vmem:[%s224 + $0x90] sm:$0xff] %v3255
      %3328 = vst [vmem:[%s224 + $0x98] sm:$0xff] %v3258
      %3329 = vst [vmem:[%s224 + $0xa0] sm:$0xff] %v3263
      %3330 = vst [vmem:[%s224 + $0xa8] sm:$0xff] %v3266
      %3331 = vst [vmem:[%s224 + $0xb0] sm:$0xff] %v3271
      %3332 = vst [vmem:[%s224 + $0xb8] sm:$0xff] %v3274
      %3333 = vst [vmem:[%s224 + $0xc0] sm:$0xff] %v3279
      %3334 = vst [vmem:[%s224 + $0xc8] sm:$0xff] %v3282
      %3335 = vst [vmem:[%s224 + $0xd0] sm:$0xff] %v3287
      %3336 = vst [vmem:[%s224 + $0xd8] sm:$0xff] %v3290
      %3337 = vst [vmem:[%s224 + $0xe0] sm:$0xff] %v3295
      %3338 = vst [vmem:[%s224 + $0xe8] sm:$0xff] %v3298
      %3339 = vst [vmem:[%s224 + $0xf0] sm:$0xff] %v3303
      %3340 = vst [vmem:[%s224 + $0xf8] sm:$0xff] %v3306
      %p3341 = scmp.lt.s32.totalorder %s16, 1
      %s3342 = scalar_select %p3341, %s16, 1
      %s3343 = smul.addr %s3342, 32
      %s3344 = smul.addr %s3343, 8
      %s3345 = scalar_lea.vmem %s5, %s3344
      // Predicated region
      $region41: #{rpn_head_level.1} parent=39 // pred_check
        %p3346 = pneg %p144
      $region42: #{rpn_head_level.1} parent=39 // pred_check_branch
        %3348 = sbr.rel (%p3346) target = $region44
      $region43: #{rpn_head_level.1} parent=39 // pred_region
        _
      $region44: #{rpn_head_level.1} parent=39 // pred_fallthru
        _
    $region40: #{rpn_head_level.1} parent=5 // pred_fallthru
      _
    %p3349 = scmp.le.s32.totalorder 2, %s11
    // Predicated region
    $region45: #{rpn_head_level.1} parent=5 // pred_check
      %p3350 = pneg %p3349
    $region46: #{rpn_head_level.1} parent=5 // pred_check_branch
      %3352 = sbr.rel (%p3350) target = $region48
    $region47: #{rpn_head_level.1} parent=5 // pred_region
      %s3353 = ssub.s32 %s11, 2
      // Predicated region
      $region49: #{rpn_head_level.1} parent=47 // pred_check
        %p3354 = pneg %p150
      $region50: #{rpn_head_level.1} parent=47 // pred_check_branch
        %3356 = sbr.rel (%p3354) target = $region52
      $region51: #{rpn_head_level.1} parent=47 // pred_region
        %p3357 = scmp.lt.s32.totalorder %s17, 1
        %s3358 = scalar_select %p3357, %s17, 1
        %s3359 = smul.addr %s3358, 32
        %s3360 = smul.addr %s3359, 8
        %s3361 = scalar_lea.vmem %s5, %s3360
      $region52: #{rpn_head_level.1} parent=47 // pred_fallthru
        _
    $region48: #{rpn_head_level.1} parent=5 // pred_fallthru
      _
  $region6: #{rpn_head_level.1} parent=0 // loop_footer
    %s15 = sadd.s32 1, %s11
  $region7: #{rpn_head_level.1} parent=0 // loop_footer_branch
    %10 = sbr.rel target = $region3
  $region8: #{rpn_head_level.1} parent=0 // loop_exit
    _

</llo_original>
